<compile_context>
chip_gen: v5e
topology: v5e:2x2
jax: 0.10.0
libtpu: 0.0.40
codegen_flags: <defaults>
</compile_context>

<pallas_src>
import math

import jax
import jax.numpy as jnp
from jax.experimental import pallas as pl
from jax.experimental.pallas import tpu as pltpu

# ---------------------------------------------------------------------------
# Config (mirrors hparams of RecurrentRegularizer)
# ---------------------------------------------------------------------------
FO = 4                # feat_scorer_output_channel
NC = 16               # num_hidden_channels
NB = 2                # num_hidden_states
SKIP_PAIRWISE = False
CI = FO + (0 if SKIP_PAIRWISE else 4)   # raw_input_channel = fo + 4
H = W = 16


# ---------------------------------------------------------------------------
# Pallas kernel
# ---------------------------------------------------------------------------
def _make_kernel(H, W, Ci, NC, NB):
    HW = H * W
    # tap t = (ky*3 + kx); (oy, ox) = (ky-1, kx-1)
    TAPS = [(oy, ox) for oy in (-1, 0, 1) for ox in (-1, 0, 1)]

    def kernel(cost_ref, beliefs_ref,
               w0x_ref, w0hzr_ref, w0hq_ref, b0_ref,
               wkx_ref, wkhzr_ref, wkhq_ref, bk_ref,
               wm_ref, bm_ref,
               final_ref, ub_ref):
        f32 = jnp.float32

        # Border-validity masks for each 3x3 tap, built once from a lane iota.
        lane = jax.lax.broadcasted_iota(jnp.int32, (1, HW), 1)
        col = lane % W
        masks = []
        for (oy, ox) in TAPS:
            m = None
            if oy == -1:
                m = lane >= W
            elif oy == 1:
                m = lane < (H - 1) * W
            if ox == -1:
                mx = col >= 1
                m = mx if m is None else (m & mx)
            elif ox == 1:
                mx = col <= W - 2
                m = mx if m is None else (m & mx)
            masks.append(m)

        def im2col(v):
            # v: (c, HW) -> (9*c, HW); row t*c + ch holds channel ch of the
            # input shifted by tap t (value at spatial offset (oy, ox)),
            # zeroed outside the image (the conv's zero padding).
            parts = []
            for (oy, ox), m in zip(TAPS, masks):
                shift = (-(oy * W + ox)) % HW      # want v[(i + oy*W + ox) % HW]
                vs = v if shift == 0 else pltpu.roll(v, shift, axis=1)
                if m is not None:
                    vs = jnp.where(m, vs, 0.0)
                parts.append(vs)
            return jnp.concatenate(parts, axis=0)

        def mm(a, b):
            return jnp.dot(a, b, preferred_element_type=f32)

        # ----------------- GRU 0: 3x3 ConvGRU (fused z/r/q) -----------------
        x = cost_ref[...]                    # (Ci, HW)
        h = beliefs_ref[0]                   # (NC, HW)
        b0 = b0_ref[...]                     # (3*NC, 1)

        x_t = im2col(x)                      # (9*Ci, HW)
        h_t = im2col(h)                      # (9*NC, HW)
        zrq_x = mm(w0x_ref[...], x_t)        # (3*NC, HW)  x-contribution of z,r,q
        zr_h = mm(w0hzr_ref[...], h_t)       # (2*NC, HW)  h-contribution of z,r

        z = jax.nn.sigmoid(zr_h[:NC] + zrq_x[:NC] + b0[:NC])
        r = jax.nn.sigmoid(zr_h[NC:] + zrq_x[NC:2 * NC] + b0[NC:2 * NC])
        q_h = mm(w0hq_ref[...], im2col(r * h))                    # (NC, HW)
        q = jnp.tanh(q_h + zrq_x[2 * NC:] + b0[2 * NC:])
        out = (1.0 - z) * h + z * q          # (NC, HW)
        ub_ref[0] = out

        # ----------------- GRUs 1..NB-1: 1x1 ConvGRU (pure matmuls) ---------
        for i in range(1, NB):
            k = i - 1
            hk = beliefs_ref[i]              # (NC, HW)
            bki = bk_ref[k]                  # (3*NC, 1)
            xc = mm(wkx_ref[k], out)         # (3*NC, HW)
            hc = mm(wkhzr_ref[k], hk)        # (2*NC, HW)
            z = jax.nn.sigmoid(hc[:NC] + xc[:NC] + bki[:NC])
            r = jax.nn.sigmoid(hc[NC:] + xc[NC:2 * NC] + bki[NC:2 * NC])
            q = jnp.tanh(mm(wkhq_ref[k], r * hk) + xc[2 * NC:] + bki[2 * NC:])
            out = (1.0 - z) * hk + z * q
            ub_ref[i] = out

        # ----------------- final 1x1 conv: (1, NC) @ (NC, HW) ---------------
        final_ref[...] = mm(wm_ref[...], out) + bm_ref[...]

    return kernel


# ---------------------------------------------------------------------------
# Parameter init (deterministic; matches torch Conv2d default uniform init)
# ---------------------------------------------------------------------------
def init_conv(key, out_c, in_c, ks):
    k1, k2 = jax.random.split(key)
    bound = 1.0 / math.sqrt(in_c * ks * ks)
    w = jax.random.uniform(k1, (out_c, in_c, ks, ks), jnp.float32, -bound, bound)
    b = jax.random.uniform(k2, (out_c,), jnp.float32, -bound, bound)
    return w, b


def init_params(key):
    params = {"gru": []}
    for i in range(NB):
        ks = 3 if i == 0 else 1
        ic = (CI if i == 0 else NC) + NC       # cat([h, x]) input channels
        layer = []
        for _ in range(3):                     # z, r, q convs
            key, sub = jax.random.split(key)
            layer.extend(init_conv(sub, NC, ic, ks))
        params["gru"].append(tuple(layer))     # (wz, bz, wr, br, wq, bq)
    key, sub = jax.random.split(key)
    params["mlp_w"], params["mlp_b"] = init_conv(sub, 1, NC, 1)
    return params


def to_kernel_params(params):
    # GRU 0 (3x3): fuse z/r/q along output rows, split the cat([h, x]) input
    # channels into h/x groups along K, and order K tap-major (ky, kx) then
    # channel so it matches the in-kernel im2col row order.
    wz, bz, wr, br, wq, bq = params["gru"][0]
    w_all = jnp.concatenate([wz, wr, wq], axis=0)                  # (3*NC, NC+CI, 3, 3)

    def tapmat(w):  # (O, c, 3, 3) -> (O, 9*c), column = (ky*3+kx)*c + ch
        O, c = w.shape[0], w.shape[1]
        return jnp.transpose(w, (0, 2, 3, 1)).reshape(O, 9 * c)

    w0x = tapmat(w_all[:, NC:])                                    # (48, 9*CI)
    w0h = tapmat(w_all[:, :NC])                                    # (48, 9*NC)
    w0h_zr, w0h_q = w0h[:2 * NC], w0h[2 * NC:]
    b0 = jnp.concatenate([bz, br, bq]).reshape(3 * NC, 1)

    # GRUs 1..NB-1 (1x1): (out, in) matrices with z/r/q fused on rows.
    nbm1 = max(NB - 1, 1)
    wkx = jnp.zeros((nbm1, 3 * NC, NC), jnp.float32)
    wkh_zr = jnp.zeros((nbm1, 2 * NC, NC), jnp.float32)
    wkh_q = jnp.zeros((nbm1, NC, NC), jnp.float32)
    bk = jnp.zeros((nbm1, 3 * NC, 1), jnp.float32)
    for i in range(1, NB):
        wzl, bzl, wrl, brl, wql, bql = params["gru"][i]
        wa = jnp.concatenate([wzl, wrl, wql], axis=0)[:, :, 0, 0]  # (48, 2*NC)
        wkx = wkx.at[i - 1].set(wa[:, NC:])
        wkh_zr = wkh_zr.at[i - 1].set(wa[:2 * NC, :NC])
        wkh_q = wkh_q.at[i - 1].set(wa[2 * NC:, :NC])
        bk = bk.at[i - 1].set(jnp.concatenate([bzl, brl, bql]).reshape(3 * NC, 1))

    wm = params["mlp_w"][:, :, 0, 0]                               # (1, NC)
    bm = params["mlp_b"].reshape(1, 1)                             # (1, 1)
    return w0x, w0h_zr, w0h_q, b0, wkx, wkh_zr, wkh_q, bk, wm, bm


# ---------------------------------------------------------------------------
# Wrapper (pure layout glue + pallas_call)
# ---------------------------------------------------------------------------
def recurrent_regularizer_pallas(cost_nchw, beliefs_nchw, params):
    assert cost_nchw.shape == (1, CI, H, W)
    assert beliefs_nchw.shape == (NB, NC, H, W)
    HW = H * W
    # NCHW is already the (C, HW) lane-dense layout after flattening spatial.
    cost_cs = cost_nchw[0].reshape(CI, HW)
    beliefs_cs = beliefs_nchw.reshape(NB, NC, HW)
    kparams = to_kernel_params(params)

    kernel = _make_kernel(H, W, CI, NC, NB)
    vmem = pl.BlockSpec(memory_space=pltpu.MemorySpace.VMEM)
    final_flat, ub_flat = pl.pallas_call(
        kernel,
        out_shape=(jax.ShapeDtypeStruct((1, HW), jnp.float32),
                   jax.ShapeDtypeStruct((NB, NC, HW), jnp.float32)),
        in_specs=[vmem] * (2 + len(kparams)),
        out_specs=(vmem, vmem),
    )(cost_cs, beliefs_cs, *kparams)

    final_nchw = final_flat.reshape(1, 1, H, W)
    ub_nchw = ub_flat.reshape(NB, NC, H, W)
    return final_nchw, ub_nchw


# ---------------------------------------------------------------------------
# Pure-JAX reference (NCHW, matches the PyTorch module semantics)
# ---------------------------------------------------------------------------
def conv2d_ref(x, w, b, pad):
    y = jax.lax.conv_general_dilated(
        x, w, window_strides=(1, 1), padding=[(pad, pad), (pad, pad)],
        dimension_numbers=("NCHW", "OIHW", "NCHW"),
        precision=jax.lax.Precision.HIGHEST)
    return y + b[None, :, None, None]


def gru_ref(x, h, wz, bz, wr, br, wq, bq, pad):
    hx = jnp.concatenate([h, x], axis=1)
    z = jax.nn.sigmoid(conv2d_ref(hx, wz, bz, pad))
    r = jax.nn.sigmoid(conv2d_ref(hx, wr, br, pad))
    q = jnp.tanh(conv2d_ref(jnp.concatenate([r * h, x], axis=1), wq, bq, pad))
    return (1.0 - z) * h + z * q


def reference(cost, beliefs, params):
    out = cost
    outs = []
    for i in range(NB):
        ks = 3 if i == 0 else 1
        out = gru_ref(out, beliefs[i:i + 1], *params["gru"][i], pad=ks // 2)
        outs.append(out)
    final = conv2d_ref(out, params["mlp_w"], params["mlp_b"], 0)
    return final, jnp.concatenate(outs, axis=0)


# ---------------------------------------------------------------------------
if __name__ == "__main__":
    key = jax.random.PRNGKey(0)
    kc, kb, kp = jax.random.split(key, 3)
    cost = jax.random.normal(kc, (1, CI, H, W), jnp.float32)          # N=1, C=fo+4
    belief_maps = jax.random.normal(kb, (NB, NC, H, W), jnp.float32)
    params = init_params(kp)

    final_k, ub_k = recurrent_regularizer_pallas(cost, belief_maps, params)
    jax.block_until_ready((final_k, ub_k))

    final_r, ub_r = reference(cost, belief_maps, params)
    assert final_k.shape == (1, 1, H, W) and ub_k.shape == (NB, NC, H, W)
    assert jnp.allclose(final_k, final_r, atol=1e-4, rtol=1e-4)
    assert jnp.allclose(ub_k, ub_r, atol=1e-4, rtol=1e-4)
    print("KERNEL_OK")
</pallas_src>

<mosaic_0001>
module attributes {stable_mosaic.version = 11 : i64} {
  func.func @kernel(%arg0: memref<8x256xf32, #tpu.memory_space<vmem>>, %arg1: memref<2x16x256xf32, #tpu.memory_space<vmem>>, %arg2: memref<48x72xf32, #tpu.memory_space<vmem>>, %arg3: memref<32x144xf32, #tpu.memory_space<vmem>>, %arg4: memref<16x144xf32, #tpu.memory_space<vmem>>, %arg5: memref<48x1xf32, #tpu.memory_space<vmem>>, %arg6: memref<1x48x16xf32, #tpu.memory_space<vmem>>, %arg7: memref<1x32x16xf32, #tpu.memory_space<vmem>>, %arg8: memref<1x16x16xf32, #tpu.memory_space<vmem>>, %arg9: memref<1x48x1xf32, #tpu.memory_space<vmem>>, %arg10: memref<1x16xf32, #tpu.memory_space<vmem>>, %arg11: memref<1x1xf32, #tpu.memory_space<vmem>>, %arg12: memref<1x256xf32, #tpu.memory_space<vmem>>, %arg13: memref<2x16x256xf32, #tpu.memory_space<vmem>>) attributes {dimension_semantics = [], scalar_prefetch = 0 : i64, scratch_operands = 0 : i64, tpu.core_type = #tpu.core_type<tc>} {
    %0 = tpu.iota {dimensions = array<i32: 1>} : vector<1x256xi32>
    %c16_i32 = arith.constant 16 : i32
    %c0_i32 = arith.constant 0 : i32
    %1 = arith.cmpi eq, %c16_i32, %c0_i32 : i32
    %c1_i32 = arith.constant 1 : i32
    %2 = arith.select %1, %c1_i32, %c16_i32 : i32
    %3 = vector.broadcast %2 : i32 to vector<1x256xi32>
    %4 = arith.remsi %0, %3 : vector<1x256xi32>
    %c0_i32_0 = arith.constant 0 : i32
    %5 = vector.broadcast %c0_i32_0 : i32 to vector<1x256xi32>
    %6 = arith.cmpi ne, %4, %5 : vector<1x256xi32>
    %c0_i32_1 = arith.constant 0 : i32
    %7 = vector.broadcast %c0_i32_1 : i32 to vector<1x256xi32>
    %8 = arith.cmpi slt, %4, %7 : vector<1x256xi32>
    %c0_i32_2 = arith.constant 0 : i32
    %9 = arith.cmpi slt, %2, %c0_i32_2 : i32
    %10 = vector.broadcast %9 : i1 to vector<1x256xi1>
    %11 = vector.broadcast %10 : vector<1x256xi1> to vector<1x256xi1>
    %12 = arith.xori %8, %11 : vector<1x256xi1>
    %13 = arith.andi %12, %6 : vector<1x256xi1>
    %14 = vector.broadcast %2 : i32 to vector<1x256xi32>
    %15 = arith.addi %4, %14 : vector<1x256xi32>
    %16 = arith.select %13, %15, %4 : vector<1x256xi1>, vector<1x256xi32>
    %c16_i32_3 = arith.constant 16 : i32
    %17 = vector.broadcast %c16_i32_3 : i32 to vector<1x256xi32>
    %18 = arith.cmpi sge, %0, %17 : vector<1x256xi32>
    %c1_i32_4 = arith.constant 1 : i32
    %19 = vector.broadcast %c1_i32_4 : i32 to vector<1x256xi32>
    %20 = arith.cmpi sge, %16, %19 : vector<1x256xi32>
    %21 = arith.andi %18, %20 : vector<1x256xi1>
    %c16_i32_5 = arith.constant 16 : i32
    %22 = vector.broadcast %c16_i32_5 : i32 to vector<1x256xi32>
    %23 = arith.cmpi sge, %0, %22 : vector<1x256xi32>
    %c16_i32_6 = arith.constant 16 : i32
    %24 = vector.broadcast %c16_i32_6 : i32 to vector<1x256xi32>
    %25 = arith.cmpi sge, %0, %24 : vector<1x256xi32>
    %c14_i32 = arith.constant 14 : i32
    %26 = vector.broadcast %c14_i32 : i32 to vector<1x256xi32>
    %27 = arith.cmpi sle, %16, %26 : vector<1x256xi32>
    %28 = arith.andi %25, %27 : vector<1x256xi1>
    %c1_i32_7 = arith.constant 1 : i32
    %29 = vector.broadcast %c1_i32_7 : i32 to vector<1x256xi32>
    %30 = arith.cmpi sge, %16, %29 : vector<1x256xi32>
    %c14_i32_8 = arith.constant 14 : i32
    %31 = vector.broadcast %c14_i32_8 : i32 to vector<1x256xi32>
    %32 = arith.cmpi sle, %16, %31 : vector<1x256xi32>
    %c240_i32 = arith.constant 240 : i32
    %33 = vector.broadcast %c240_i32 : i32 to vector<1x256xi32>
    %34 = arith.cmpi slt, %0, %33 : vector<1x256xi32>
    %c1_i32_9 = arith.constant 1 : i32
    %35 = vector.broadcast %c1_i32_9 : i32 to vector<1x256xi32>
    %36 = arith.cmpi sge, %16, %35 : vector<1x256xi32>
    %37 = arith.andi %34, %36 : vector<1x256xi1>
    %c240_i32_10 = arith.constant 240 : i32
    %38 = vector.broadcast %c240_i32_10 : i32 to vector<1x256xi32>
    %39 = arith.cmpi slt, %0, %38 : vector<1x256xi32>
    %c240_i32_11 = arith.constant 240 : i32
    %40 = vector.broadcast %c240_i32_11 : i32 to vector<1x256xi32>
    %41 = arith.cmpi slt, %0, %40 : vector<1x256xi32>
    %c14_i32_12 = arith.constant 14 : i32
    %42 = vector.broadcast %c14_i32_12 : i32 to vector<1x256xi32>
    %43 = arith.cmpi sle, %16, %42 : vector<1x256xi32>
    %44 = arith.andi %41, %43 : vector<1x256xi1>
    %c0 = arith.constant 0 : index
    %c0_13 = arith.constant 0 : index
    %45 = vector.load %arg0[%c0, %c0_13] : memref<8x256xf32, #tpu.memory_space<vmem>>, vector<8x256xf32>
    %c0_14 = arith.constant 0 : index
    %c0_15 = arith.constant 0 : index
    %c0_16 = arith.constant 0 : index
    %46 = vector.load %arg1[%c0_14, %c0_15, %c0_16] : memref<2x16x256xf32, #tpu.memory_space<vmem>>, vector<1x16x256xf32>
    %47 = vector.shape_cast %46 : vector<1x16x256xf32> to vector<16x256xf32>
    %c0_17 = arith.constant 0 : index
    %c0_18 = arith.constant 0 : index
    %48 = vector.load %arg5[%c0_17, %c0_18] : memref<48x1xf32, #tpu.memory_space<vmem>>, vector<48x1xf32>
    %c17_i32 = arith.constant 17 : i32
    %49 = tpu.dynamic_rotate %45 by %c17_i32 dim 1 : vector<8x256xf32>, i32 -> vector<8x256xf32>
    %cst = arith.constant 0.000000e+00 : f32
    %50 = vector.shape_cast %21 : vector<1x256xi1> to vector<1x256xi1>
    %51 = vector.broadcast %50 : vector<1x256xi1> to vector<8x256xi1>
    %52 = vector.broadcast %cst : f32 to vector<8x256xf32>
    %53 = arith.select %51, %49, %52 : vector<8x256xi1>, vector<8x256xf32>
    %c16_i32_19 = arith.constant 16 : i32
    %54 = tpu.dynamic_rotate %45 by %c16_i32_19 dim 1 : vector<8x256xf32>, i32 -> vector<8x256xf32>
    %cst_20 = arith.constant 0.000000e+00 : f32
    %55 = vector.shape_cast %23 : vector<1x256xi1> to vector<1x256xi1>
    %56 = vector.broadcast %55 : vector<1x256xi1> to vector<8x256xi1>
    %57 = vector.broadcast %cst_20 : f32 to vector<8x256xf32>
    %58 = arith.select %56, %54, %57 : vector<8x256xi1>, vector<8x256xf32>
    %c15_i32 = arith.constant 15 : i32
    %59 = tpu.dynamic_rotate %45 by %c15_i32 dim 1 : vector<8x256xf32>, i32 -> vector<8x256xf32>
    %cst_21 = arith.constant 0.000000e+00 : f32
    %60 = vector.shape_cast %28 : vector<1x256xi1> to vector<1x256xi1>
    %61 = vector.broadcast %60 : vector<1x256xi1> to vector<8x256xi1>
    %62 = vector.broadcast %cst_21 : f32 to vector<8x256xf32>
    %63 = arith.select %61, %59, %62 : vector<8x256xi1>, vector<8x256xf32>
    %c1_i32_22 = arith.constant 1 : i32
    %64 = tpu.dynamic_rotate %45 by %c1_i32_22 dim 1 : vector<8x256xf32>, i32 -> vector<8x256xf32>
    %cst_23 = arith.constant 0.000000e+00 : f32
    %65 = vector.shape_cast %30 : vector<1x256xi1> to vector<1x256xi1>
    %66 = vector.broadcast %65 : vector<1x256xi1> to vector<8x256xi1>
    %67 = vector.broadcast %cst_23 : f32 to vector<8x256xf32>
    %68 = arith.select %66, %64, %67 : vector<8x256xi1>, vector<8x256xf32>
    %c255_i32 = arith.constant 255 : i32
    %69 = tpu.dynamic_rotate %45 by %c255_i32 dim 1 : vector<8x256xf32>, i32 -> vector<8x256xf32>
    %cst_24 = arith.constant 0.000000e+00 : f32
    %70 = vector.shape_cast %32 : vector<1x256xi1> to vector<1x256xi1>
    %71 = vector.broadcast %70 : vector<1x256xi1> to vector<8x256xi1>
    %72 = vector.broadcast %cst_24 : f32 to vector<8x256xf32>
    %73 = arith.select %71, %69, %72 : vector<8x256xi1>, vector<8x256xf32>
    %c241_i32 = arith.constant 241 : i32
    %74 = tpu.dynamic_rotate %45 by %c241_i32 dim 1 : vector<8x256xf32>, i32 -> vector<8x256xf32>
    %cst_25 = arith.constant 0.000000e+00 : f32
    %75 = vector.shape_cast %37 : vector<1x256xi1> to vector<1x256xi1>
    %76 = vector.broadcast %75 : vector<1x256xi1> to vector<8x256xi1>
    %77 = vector.broadcast %cst_25 : f32 to vector<8x256xf32>
    %78 = arith.select %76, %74, %77 : vector<8x256xi1>, vector<8x256xf32>
    %c240_i32_26 = arith.constant 240 : i32
    %79 = tpu.dynamic_rotate %45 by %c240_i32_26 dim 1 : vector<8x256xf32>, i32 -> vector<8x256xf32>
    %cst_27 = arith.constant 0.000000e+00 : f32
    %80 = vector.shape_cast %39 : vector<1x256xi1> to vector<1x256xi1>
    %81 = vector.broadcast %80 : vector<1x256xi1> to vector<8x256xi1>
    %82 = vector.broadcast %cst_27 : f32 to vector<8x256xf32>
    %83 = arith.select %81, %79, %82 : vector<8x256xi1>, vector<8x256xf32>
    %c239_i32 = arith.constant 239 : i32
    %84 = tpu.dynamic_rotate %45 by %c239_i32 dim 1 : vector<8x256xf32>, i32 -> vector<8x256xf32>
    %cst_28 = arith.constant 0.000000e+00 : f32
    %85 = vector.shape_cast %44 : vector<1x256xi1> to vector<1x256xi1>
    %86 = vector.broadcast %85 : vector<1x256xi1> to vector<8x256xi1>
    %87 = vector.broadcast %cst_28 : f32 to vector<8x256xf32>
    %88 = arith.select %86, %84, %87 : vector<8x256xi1>, vector<8x256xf32>
    %89 = tpu.concatenate %53, %58, %63, %68, %45, %73, %78, %83, %88 in 0 : vector<8x256xf32>, vector<8x256xf32>, vector<8x256xf32>, vector<8x256xf32>, vector<8x256xf32>, vector<8x256xf32>, vector<8x256xf32>, vector<8x256xf32>, vector<8x256xf32> -> vector<72x256xf32>
    %c17_i32_29 = arith.constant 17 : i32
    %90 = tpu.dynamic_rotate %47 by %c17_i32_29 dim 1 : vector<16x256xf32>, i32 -> vector<16x256xf32>
    %cst_30 = arith.constant 0.000000e+00 : f32
    %91 = vector.shape_cast %21 : vector<1x256xi1> to vector<1x256xi1>
    %92 = vector.broadcast %91 : vector<1x256xi1> to vector<16x256xi1>
    %93 = vector.broadcast %cst_30 : f32 to vector<16x256xf32>
    %94 = arith.select %92, %90, %93 : vector<16x256xi1>, vector<16x256xf32>
    %c16_i32_31 = arith.constant 16 : i32
    %95 = tpu.dynamic_rotate %47 by %c16_i32_31 dim 1 : vector<16x256xf32>, i32 -> vector<16x256xf32>
    %cst_32 = arith.constant 0.000000e+00 : f32
    %96 = vector.shape_cast %23 : vector<1x256xi1> to vector<1x256xi1>
    %97 = vector.broadcast %96 : vector<1x256xi1> to vector<16x256xi1>
    %98 = vector.broadcast %cst_32 : f32 to vector<16x256xf32>
    %99 = arith.select %97, %95, %98 : vector<16x256xi1>, vector<16x256xf32>
    %c15_i32_33 = arith.constant 15 : i32
    %100 = tpu.dynamic_rotate %47 by %c15_i32_33 dim 1 : vector<16x256xf32>, i32 -> vector<16x256xf32>
    %cst_34 = arith.constant 0.000000e+00 : f32
    %101 = vector.shape_cast %28 : vector<1x256xi1> to vector<1x256xi1>
    %102 = vector.broadcast %101 : vector<1x256xi1> to vector<16x256xi1>
    %103 = vector.broadcast %cst_34 : f32 to vector<16x256xf32>
    %104 = arith.select %102, %100, %103 : vector<16x256xi1>, vector<16x256xf32>
    %c1_i32_35 = arith.constant 1 : i32
    %105 = tpu.dynamic_rotate %47 by %c1_i32_35 dim 1 : vector<16x256xf32>, i32 -> vector<16x256xf32>
    %cst_36 = arith.constant 0.000000e+00 : f32
    %106 = vector.shape_cast %30 : vector<1x256xi1> to vector<1x256xi1>
    %107 = vector.broadcast %106 : vector<1x256xi1> to vector<16x256xi1>
    %108 = vector.broadcast %cst_36 : f32 to vector<16x256xf32>
    %109 = arith.select %107, %105, %108 : vector<16x256xi1>, vector<16x256xf32>
    %c255_i32_37 = arith.constant 255 : i32
    %110 = tpu.dynamic_rotate %47 by %c255_i32_37 dim 1 : vector<16x256xf32>, i32 -> vector<16x256xf32>
    %cst_38 = arith.constant 0.000000e+00 : f32
    %111 = vector.shape_cast %32 : vector<1x256xi1> to vector<1x256xi1>
    %112 = vector.broadcast %111 : vector<1x256xi1> to vector<16x256xi1>
    %113 = vector.broadcast %cst_38 : f32 to vector<16x256xf32>
    %114 = arith.select %112, %110, %113 : vector<16x256xi1>, vector<16x256xf32>
    %c241_i32_39 = arith.constant 241 : i32
    %115 = tpu.dynamic_rotate %47 by %c241_i32_39 dim 1 : vector<16x256xf32>, i32 -> vector<16x256xf32>
    %cst_40 = arith.constant 0.000000e+00 : f32
    %116 = vector.shape_cast %37 : vector<1x256xi1> to vector<1x256xi1>
    %117 = vector.broadcast %116 : vector<1x256xi1> to vector<16x256xi1>
    %118 = vector.broadcast %cst_40 : f32 to vector<16x256xf32>
    %119 = arith.select %117, %115, %118 : vector<16x256xi1>, vector<16x256xf32>
    %c240_i32_41 = arith.constant 240 : i32
    %120 = tpu.dynamic_rotate %47 by %c240_i32_41 dim 1 : vector<16x256xf32>, i32 -> vector<16x256xf32>
    %cst_42 = arith.constant 0.000000e+00 : f32
    %121 = vector.shape_cast %39 : vector<1x256xi1> to vector<1x256xi1>
    %122 = vector.broadcast %121 : vector<1x256xi1> to vector<16x256xi1>
    %123 = vector.broadcast %cst_42 : f32 to vector<16x256xf32>
    %124 = arith.select %122, %120, %123 : vector<16x256xi1>, vector<16x256xf32>
    %c239_i32_43 = arith.constant 239 : i32
    %125 = tpu.dynamic_rotate %47 by %c239_i32_43 dim 1 : vector<16x256xf32>, i32 -> vector<16x256xf32>
    %cst_44 = arith.constant 0.000000e+00 : f32
    %126 = vector.shape_cast %44 : vector<1x256xi1> to vector<1x256xi1>
    %127 = vector.broadcast %126 : vector<1x256xi1> to vector<16x256xi1>
    %128 = vector.broadcast %cst_44 : f32 to vector<16x256xf32>
    %129 = arith.select %127, %125, %128 : vector<16x256xi1>, vector<16x256xf32>
    %130 = tpu.concatenate %94, %99, %104, %109, %47, %114, %119, %124, %129 in 0 : vector<16x256xf32>, vector<16x256xf32>, vector<16x256xf32>, vector<16x256xf32>, vector<16x256xf32>, vector<16x256xf32>, vector<16x256xf32>, vector<16x256xf32>, vector<16x256xf32> -> vector<144x256xf32>
    %c0_45 = arith.constant 0 : index
    %c0_46 = arith.constant 0 : index
    %131 = vector.load %arg2[%c0_45, %c0_46] : memref<48x72xf32, #tpu.memory_space<vmem>>, vector<48x72xf32>
    %cst_47 = arith.constant dense<0.000000e+00> : vector<48x256xf32>
    %132 = tpu.matmul %131, %89, %cst_47 {dimension_numbers = #tpu.dot_dimension_numbers<[1], [0], [0], [1], [0, 0, 1, 1], [], []>} : vector<48x72xf32>, vector<72x256xf32>, vector<48x256xf32> -> vector<48x256xf32>
    %c0_48 = arith.constant 0 : index
    %c0_49 = arith.constant 0 : index
    %133 = vector.load %arg3[%c0_48, %c0_49] : memref<32x144xf32, #tpu.memory_space<vmem>>, vector<32x144xf32>
    %cst_50 = arith.constant dense<0.000000e+00> : vector<32x256xf32>
    %134 = tpu.matmul %133, %130, %cst_50 {dimension_numbers = #tpu.dot_dimension_numbers<[1], [0], [0], [1], [0, 0, 1, 1], [], []>} : vector<32x144xf32>, vector<144x256xf32>, vector<32x256xf32> -> vector<32x256xf32>
    %135 = vector.extract_strided_slice %134 {offsets = [0, 0], sizes = [16, 256], strides = [1, 1]} : vector<32x256xf32> to vector<16x256xf32>
    %136 = vector.extract_strided_slice %132 {offsets = [0, 0], sizes = [16, 256], strides = [1, 1]} : vector<48x256xf32> to vector<16x256xf32>
    %137 = arith.addf %135, %136 : vector<16x256xf32>
    %138 = vector.extract_strided_slice %48 {offsets = [0, 0], sizes = [16, 1], strides = [1, 1]} : vector<48x1xf32> to vector<16x1xf32>
    %139 = vector.broadcast %138 : vector<16x1xf32> to vector<16x256xf32>
    %140 = arith.addf %137, %139 : vector<16x256xf32>
    %141 = arith.negf %140 : vector<16x256xf32>
    %142 = math.exp %141 : vector<16x256xf32>
    %cst_51 = arith.constant 1.000000e+00 : f32
    %143 = vector.broadcast %cst_51 : f32 to vector<16x256xf32>
    %144 = arith.addf %143, %142 : vector<16x256xf32>
    %145 = arith.divf %143, %144 : vector<16x256xf32>
    %146 = vector.extract_strided_slice %134 {offsets = [16, 0], sizes = [16, 256], strides = [1, 1]} : vector<32x256xf32> to vector<16x256xf32>
    %147 = vector.extract_strided_slice %132 {offsets = [16, 0], sizes = [16, 256], strides = [1, 1]} : vector<48x256xf32> to vector<16x256xf32>
    %148 = arith.addf %146, %147 : vector<16x256xf32>
    %149 = vector.extract_strided_slice %48 {offsets = [16, 0], sizes = [16, 1], strides = [1, 1]} : vector<48x1xf32> to vector<16x1xf32>
    %150 = vector.broadcast %149 : vector<16x1xf32> to vector<16x256xf32>
    %151 = arith.addf %148, %150 : vector<16x256xf32>
    %152 = arith.negf %151 : vector<16x256xf32>
    %153 = math.exp %152 : vector<16x256xf32>
    %cst_52 = arith.constant 1.000000e+00 : f32
    %154 = vector.broadcast %cst_52 : f32 to vector<16x256xf32>
    %155 = arith.addf %154, %153 : vector<16x256xf32>
    %156 = arith.divf %154, %155 : vector<16x256xf32>
    %c0_53 = arith.constant 0 : index
    %c0_54 = arith.constant 0 : index
    %157 = vector.load %arg4[%c0_53, %c0_54] : memref<16x144xf32, #tpu.memory_space<vmem>>, vector<16x144xf32>
    %158 = arith.mulf %156, %47 : vector<16x256xf32>
    %c17_i32_55 = arith.constant 17 : i32
    %159 = tpu.dynamic_rotate %158 by %c17_i32_55 dim 1 : vector<16x256xf32>, i32 -> vector<16x256xf32>
    %cst_56 = arith.constant 0.000000e+00 : f32
    %160 = vector.shape_cast %21 : vector<1x256xi1> to vector<1x256xi1>
    %161 = vector.broadcast %160 : vector<1x256xi1> to vector<16x256xi1>
    %162 = vector.broadcast %cst_56 : f32 to vector<16x256xf32>
    %163 = arith.select %161, %159, %162 : vector<16x256xi1>, vector<16x256xf32>
    %c16_i32_57 = arith.constant 16 : i32
    %164 = tpu.dynamic_rotate %158 by %c16_i32_57 dim 1 : vector<16x256xf32>, i32 -> vector<16x256xf32>
    %cst_58 = arith.constant 0.000000e+00 : f32
    %165 = vector.shape_cast %23 : vector<1x256xi1> to vector<1x256xi1>
    %166 = vector.broadcast %165 : vector<1x256xi1> to vector<16x256xi1>
    %167 = vector.broadcast %cst_58 : f32 to vector<16x256xf32>
    %168 = arith.select %166, %164, %167 : vector<16x256xi1>, vector<16x256xf32>
    %c15_i32_59 = arith.constant 15 : i32
    %169 = tpu.dynamic_rotate %158 by %c15_i32_59 dim 1 : vector<16x256xf32>, i32 -> vector<16x256xf32>
    %cst_60 = arith.constant 0.000000e+00 : f32
    %170 = vector.shape_cast %28 : vector<1x256xi1> to vector<1x256xi1>
    %171 = vector.broadcast %170 : vector<1x256xi1> to vector<16x256xi1>
    %172 = vector.broadcast %cst_60 : f32 to vector<16x256xf32>
    %173 = arith.select %171, %169, %172 : vector<16x256xi1>, vector<16x256xf32>
    %c1_i32_61 = arith.constant 1 : i32
    %174 = tpu.dynamic_rotate %158 by %c1_i32_61 dim 1 : vector<16x256xf32>, i32 -> vector<16x256xf32>
    %cst_62 = arith.constant 0.000000e+00 : f32
    %175 = vector.shape_cast %30 : vector<1x256xi1> to vector<1x256xi1>
    %176 = vector.broadcast %175 : vector<1x256xi1> to vector<16x256xi1>
    %177 = vector.broadcast %cst_62 : f32 to vector<16x256xf32>
    %178 = arith.select %176, %174, %177 : vector<16x256xi1>, vector<16x256xf32>
    %c255_i32_63 = arith.constant 255 : i32
    %179 = tpu.dynamic_rotate %158 by %c255_i32_63 dim 1 : vector<16x256xf32>, i32 -> vector<16x256xf32>
    %cst_64 = arith.constant 0.000000e+00 : f32
    %180 = vector.shape_cast %32 : vector<1x256xi1> to vector<1x256xi1>
    %181 = vector.broadcast %180 : vector<1x256xi1> to vector<16x256xi1>
    %182 = vector.broadcast %cst_64 : f32 to vector<16x256xf32>
    %183 = arith.select %181, %179, %182 : vector<16x256xi1>, vector<16x256xf32>
    %c241_i32_65 = arith.constant 241 : i32
    %184 = tpu.dynamic_rotate %158 by %c241_i32_65 dim 1 : vector<16x256xf32>, i32 -> vector<16x256xf32>
    %cst_66 = arith.constant 0.000000e+00 : f32
    %185 = vector.shape_cast %37 : vector<1x256xi1> to vector<1x256xi1>
    %186 = vector.broadcast %185 : vector<1x256xi1> to vector<16x256xi1>
    %187 = vector.broadcast %cst_66 : f32 to vector<16x256xf32>
    %188 = arith.select %186, %184, %187 : vector<16x256xi1>, vector<16x256xf32>
    %c240_i32_67 = arith.constant 240 : i32
    %189 = tpu.dynamic_rotate %158 by %c240_i32_67 dim 1 : vector<16x256xf32>, i32 -> vector<16x256xf32>
    %cst_68 = arith.constant 0.000000e+00 : f32
    %190 = vector.shape_cast %39 : vector<1x256xi1> to vector<1x256xi1>
    %191 = vector.broadcast %190 : vector<1x256xi1> to vector<16x256xi1>
    %192 = vector.broadcast %cst_68 : f32 to vector<16x256xf32>
    %193 = arith.select %191, %189, %192 : vector<16x256xi1>, vector<16x256xf32>
    %c239_i32_69 = arith.constant 239 : i32
    %194 = tpu.dynamic_rotate %158 by %c239_i32_69 dim 1 : vector<16x256xf32>, i32 -> vector<16x256xf32>
    %cst_70 = arith.constant 0.000000e+00 : f32
    %195 = vector.shape_cast %44 : vector<1x256xi1> to vector<1x256xi1>
    %196 = vector.broadcast %195 : vector<1x256xi1> to vector<16x256xi1>
    %197 = vector.broadcast %cst_70 : f32 to vector<16x256xf32>
    %198 = arith.select %196, %194, %197 : vector<16x256xi1>, vector<16x256xf32>
    %199 = tpu.concatenate %163, %168, %173, %178, %158, %183, %188, %193, %198 in 0 : vector<16x256xf32>, vector<16x256xf32>, vector<16x256xf32>, vector<16x256xf32>, vector<16x256xf32>, vector<16x256xf32>, vector<16x256xf32>, vector<16x256xf32>, vector<16x256xf32> -> vector<144x256xf32>
    %cst_71 = arith.constant dense<0.000000e+00> : vector<16x256xf32>
    %200 = tpu.matmul %157, %199, %cst_71 {dimension_numbers = #tpu.dot_dimension_numbers<[1], [0], [0], [1], [0, 0, 1, 1], [], []>} : vector<16x144xf32>, vector<144x256xf32>, vector<16x256xf32> -> vector<16x256xf32>
    %201 = vector.extract_strided_slice %132 {offsets = [32, 0], sizes = [16, 256], strides = [1, 1]} : vector<48x256xf32> to vector<16x256xf32>
    %202 = arith.addf %200, %201 : vector<16x256xf32>
    %203 = vector.extract_strided_slice %48 {offsets = [32, 0], sizes = [16, 1], strides = [1, 1]} : vector<48x1xf32> to vector<16x1xf32>
    %204 = vector.broadcast %203 : vector<16x1xf32> to vector<16x256xf32>
    %205 = arith.addf %202, %204 : vector<16x256xf32>
    %206 = math.tanh %205 : vector<16x256xf32>
    %cst_72 = arith.constant 1.000000e+00 : f32
    %207 = vector.broadcast %cst_72 : f32 to vector<16x256xf32>
    %208 = arith.subf %207, %145 : vector<16x256xf32>
    %209 = arith.mulf %208, %47 : vector<16x256xf32>
    %210 = arith.mulf %145, %206 : vector<16x256xf32>
    %211 = arith.addf %209, %210 : vector<16x256xf32>
    %c0_73 = arith.constant 0 : index
    %c0_74 = arith.constant 0 : index
    %c0_75 = arith.constant 0 : index
    %212 = vector.load %arg13[%c0_73, %c0_74, %c0_75] : memref<2x16x256xf32, #tpu.memory_space<vmem>>, vector<1x16x256xf32>
    %213 = vector.shape_cast %212 : vector<1x16x256xf32> to vector<16x256xf32>
    %214 = vector.shape_cast %211 : vector<16x256xf32> to vector<1x16x256xf32>
    tpu.vector_store %arg13[%c0_73, %c0_74, %c0_75], %214 {strides = array<i32>} : memref<2x16x256xf32, #tpu.memory_space<vmem>>, vector<1x16x256xf32>,
    %c1 = arith.constant 1 : index
    %c0_76 = arith.constant 0 : index
    %c0_77 = arith.constant 0 : index
    %215 = vector.load %arg1[%c1, %c0_76, %c0_77] : memref<2x16x256xf32, #tpu.memory_space<vmem>>, vector<1x16x256xf32>
    %216 = vector.shape_cast %215 : vector<1x16x256xf32> to vector<16x256xf32>
    %c0_78 = arith.constant 0 : index
    %c0_79 = arith.constant 0 : index
    %c0_80 = arith.constant 0 : index
    %217 = vector.load %arg9[%c0_78, %c0_79, %c0_80] : memref<1x48x1xf32, #tpu.memory_space<vmem>>, vector<1x48x1xf32>
    %218 = vector.shape_cast %217 : vector<1x48x1xf32> to vector<48x1xf32>
    %c0_81 = arith.constant 0 : index
    %c0_82 = arith.constant 0 : index
    %c0_83 = arith.constant 0 : index
    %219 = vector.load %arg6[%c0_81, %c0_82, %c0_83] : memref<1x48x16xf32, #tpu.memory_space<vmem>>, vector<1x48x16xf32>
    %220 = vector.shape_cast %219 : vector<1x48x16xf32> to vector<48x16xf32>
    %cst_84 = arith.constant dense<0.000000e+00> : vector<48x256xf32>
    %221 = tpu.matmul %220, %211, %cst_84 {dimension_numbers = #tpu.dot_dimension_numbers<[1], [0], [0], [1], [0, 0, 1, 1], [], []>} : vector<48x16xf32>, vector<16x256xf32>, vector<48x256xf32> -> vector<48x256xf32>
    %c0_85 = arith.constant 0 : index
    %c0_86 = arith.constant 0 : index
    %c0_87 = arith.constant 0 : index
    %222 = vector.load %arg7[%c0_85, %c0_86, %c0_87] : memref<1x32x16xf32, #tpu.memory_space<vmem>>, vector<1x32x16xf32>
    %223 = vector.shape_cast %222 : vector<1x32x16xf32> to vector<32x16xf32>
    %cst_88 = arith.constant dense<0.000000e+00> : vector<32x256xf32>
    %224 = tpu.matmul %223, %216, %cst_88 {dimension_numbers = #tpu.dot_dimension_numbers<[1], [0], [0], [1], [0, 0, 1, 1], [], []>} : vector<32x16xf32>, vector<16x256xf32>, vector<32x256xf32> -> vector<32x256xf32>
    %225 = vector.extract_strided_slice %224 {offsets = [0, 0], sizes = [16, 256], strides = [1, 1]} : vector<32x256xf32> to vector<16x256xf32>
    %226 = vector.extract_strided_slice %221 {offsets = [0, 0], sizes = [16, 256], strides = [1, 1]} : vector<48x256xf32> to vector<16x256xf32>
    %227 = arith.addf %225, %226 : vector<16x256xf32>
    %228 = vector.extract_strided_slice %218 {offsets = [0, 0], sizes = [16, 1], strides = [1, 1]} : vector<48x1xf32> to vector<16x1xf32>
    %229 = vector.broadcast %228 : vector<16x1xf32> to vector<16x256xf32>
    %230 = arith.addf %227, %229 : vector<16x256xf32>
    %231 = arith.negf %230 : vector<16x256xf32>
    %232 = math.exp %231 : vector<16x256xf32>
    %cst_89 = arith.constant 1.000000e+00 : f32
    %233 = vector.broadcast %cst_89 : f32 to vector<16x256xf32>
    %234 = arith.addf %233, %232 : vector<16x256xf32>
    %235 = arith.divf %233, %234 : vector<16x256xf32>
    %236 = vector.extract_strided_slice %224 {offsets = [16, 0], sizes = [16, 256], strides = [1, 1]} : vector<32x256xf32> to vector<16x256xf32>
    %237 = vector.extract_strided_slice %221 {offsets = [16, 0], sizes = [16, 256], strides = [1, 1]} : vector<48x256xf32> to vector<16x256xf32>
    %238 = arith.addf %236, %237 : vector<16x256xf32>
    %239 = vector.extract_strided_slice %218 {offsets = [16, 0], sizes = [16, 1], strides = [1, 1]} : vector<48x1xf32> to vector<16x1xf32>
    %240 = vector.broadcast %239 : vector<16x1xf32> to vector<16x256xf32>
    %241 = arith.addf %238, %240 : vector<16x256xf32>
    %242 = arith.negf %241 : vector<16x256xf32>
    %243 = math.exp %242 : vector<16x256xf32>
    %cst_90 = arith.constant 1.000000e+00 : f32
    %244 = vector.broadcast %cst_90 : f32 to vector<16x256xf32>
    %245 = arith.addf %244, %243 : vector<16x256xf32>
    %246 = arith.divf %244, %245 : vector<16x256xf32>
    %c0_91 = arith.constant 0 : index
    %c0_92 = arith.constant 0 : index
    %c0_93 = arith.constant 0 : index
    %247 = vector.load %arg8[%c0_91, %c0_92, %c0_93] : memref<1x16x16xf32, #tpu.memory_space<vmem>>, vector<1x16x16xf32>
    %248 = vector.shape_cast %247 : vector<1x16x16xf32> to vector<16x16xf32>
    %249 = arith.mulf %246, %216 : vector<16x256xf32>
    %cst_94 = arith.constant dense<0.000000e+00> : vector<16x256xf32>
    %250 = tpu.matmul %248, %249, %cst_94 {dimension_numbers = #tpu.dot_dimension_numbers<[1], [0], [0], [1], [0, 0, 1, 1], [], []>} : vector<16x16xf32>, vector<16x256xf32>, vector<16x256xf32> -> vector<16x256xf32>
    %251 = vector.extract_strided_slice %221 {offsets = [32, 0], sizes = [16, 256], strides = [1, 1]} : vector<48x256xf32> to vector<16x256xf32>
    %252 = arith.addf %250, %251 : vector<16x256xf32>
    %253 = vector.extract_strided_slice %218 {offsets = [32, 0], sizes = [16, 1], strides = [1, 1]} : vector<48x1xf32> to vector<16x1xf32>
    %254 = vector.broadcast %253 : vector<16x1xf32> to vector<16x256xf32>
    %255 = arith.addf %252, %254 : vector<16x256xf32>
    %256 = math.tanh %255 : vector<16x256xf32>
    %cst_95 = arith.constant 1.000000e+00 : f32
    %257 = vector.broadcast %cst_95 : f32 to vector<16x256xf32>
    %258 = arith.subf %257, %235 : vector<16x256xf32>
    %259 = arith.mulf %258, %216 : vector<16x256xf32>
    %260 = arith.mulf %235, %256 : vector<16x256xf32>
    %261 = arith.addf %259, %260 : vector<16x256xf32>
    %c1_96 = arith.constant 1 : index
    %c0_97 = arith.constant 0 : index
    %c0_98 = arith.constant 0 : index
    %262 = vector.load %arg13[%c1_96, %c0_97, %c0_98] : memref<2x16x256xf32, #tpu.memory_space<vmem>>, vector<1x16x256xf32>
    %263 = vector.shape_cast %262 : vector<1x16x256xf32> to vector<16x256xf32>
    %264 = vector.shape_cast %261 : vector<16x256xf32> to vector<1x16x256xf32>
    tpu.vector_store %arg13[%c1_96, %c0_97, %c0_98], %264 {strides = array<i32>} : memref<2x16x256xf32, #tpu.memory_space<vmem>>, vector<1x16x256xf32>,
    %c0_99 = arith.constant 0 : index
    %c0_100 = arith.constant 0 : index
    %265 = vector.load %arg10[%c0_99, %c0_100] : memref<1x16xf32, #tpu.memory_space<vmem>>, vector<1x16xf32>
    %cst_101 = arith.constant dense<0.000000e+00> : vector<1x256xf32>
    %266 = tpu.matmul %265, %261, %cst_101 {dimension_numbers = #tpu.dot_dimension_numbers<[1], [0], [0], [1], [0, 0, 1, 1], [], []>} : vector<1x16xf32>, vector<16x256xf32>, vector<1x256xf32> -> vector<1x256xf32>
    %c0_102 = arith.constant 0 : index
    %c0_103 = arith.constant 0 : index
    %267 = vector.load %arg11[%c0_102, %c0_103] : memref<1x1xf32, #tpu.memory_space<vmem>>, vector<1x1xf32>
    %268 = vector.broadcast %267 : vector<1x1xf32> to vector<1x256xf32>
    %269 = arith.addf %266, %268 : vector<1x256xf32>
    %c0_104 = arith.constant 0 : index
    %c0_105 = arith.constant 0 : index
    %270 = vector.load %arg12[%c0_104, %c0_105] : memref<1x256xf32, #tpu.memory_space<vmem>>, vector<1x256xf32>
    tpu.vector_store %arg12[%c0_104, %c0_105], %269 {strides = array<i32>} : memref<1x256xf32, #tpu.memory_space<vmem>>, vector<1x256xf32>,
    return
  }
}

</mosaic_0001>

<llo_original>
// kernel: tpu_custom_call.1
$region0: #{tpu_custom_call.1}
  #allocation0 [shape = 'u32[]', space=smem, size = 0x4, offset = 0x4, fixed_abs, tag = 'smem constant byte address 0x4 - core index']
  #allocation1 [shape = 'u32[72,128]{1,0:T(1,128)}', space=vmem, size = 0x9000, scoped, tag = 'internal scratch']
  #allocation2 [shape = 'f32[1,1]{1,0:T(1,128)S(1)}', space=vmem, size = 0x200, scoped, tag = 'scoped memory for tpu_custom_call.1']
  %s0 = inlined_call_operand.vmem [shape: f32[8,256], index: 0, kind: input, shape index: {}]
  %s1 = inlined_call_operand.vmem [shape: f32[2,16,256], index: 1, kind: input, shape index: {}]
  %s2 = inlined_call_operand.vmem [shape: f32[48,72], index: 2, kind: input, shape index: {}]
  %s3 = inlined_call_operand.vmem [shape: f32[32,144], index: 3, kind: input, shape index: {}]
  %s4 = inlined_call_operand.hbm [shape: f32[16,144], index: 4, kind: input, shape index: {}]
  %s5 = inlined_call_operand.vmem [shape: f32[48,1], index: 5, kind: input, shape index: {}]
  %s6 = inlined_call_operand.vmem [shape: f32[1,48,16], index: 6, kind: input, shape index: {}]
  %s7 = inlined_call_operand.vmem [shape: f32[1,32,16], index: 7, kind: input, shape index: {}]
  %s8 = inlined_call_operand.hbm [shape: f32[1,16,16], index: 8, kind: input, shape index: {}]
  %s9 = inlined_call_operand.vmem [shape: f32[1,48,1], index: 9, kind: input, shape index: {}]
  %s10 = inlined_call_operand.vmem [shape: f32[1,16], index: 10, kind: input, shape index: {}]
  %s11 = inlined_call_operand.<no memory space> [shape: f32[1,1], index: 11, kind: input, shape index: {}]
  %s12 = inlined_call_operand.hbm [shape: f32[1,256], index: 12, kind: output, shape index: {0}]
  %s13 = inlined_call_operand.hbm [shape: f32[2,16,256], index: 13, kind: output, shape index: {1}]
  %14 = xla_tuple %s12, %s13
  %s15 = sld [smem:[#allocation0]]
  $region74: #{tpu_custom_call.1} parent=0
    _
  %s17 = ssub.s32 1, %s15
  %s18 = scalar_select 0, %s17, %s15
  %v19 = vstv %s11
  %20 = vst [vmem:[#allocation2] sm:$0x1] %v19
  $region1: #{tpu_custom_call.1} parent=0
    #allocation3 [shape = 'u8[16384]{0}', space=vmem, size = 0x4000, scoped, tag = 'input window, operand 4, single buffered']
    #allocation4 [shape = 's32[1]{0}', space=sflag, size = 0x4, scoped, tag = 'scoped memory for tpu_custom_call.1']
    #allocation5 [shape = 's32[1]{0}', space=sflag, size = 0x4, scoped, tag = 'scoped memory for tpu_custom_call.1']
    #allocation6 [shape = 'u8[8192]{0}', space=vmem, size = 0x2000, scoped, tag = 'input window, operand 8, single buffered']
    #allocation7 [shape = 's32[1]{0}', space=sflag, size = 0x4, scoped, tag = 'scoped memory for tpu_custom_call.1']
    #allocation8 [shape = 'u8[1024]{0}', space=vmem, size = 0x400, scoped, tag = 'output window, operand 0, single buffered']
    #allocation9 [shape = 'u8[32768]{0}', space=vmem, size = 0x8000, scoped, tag = 'output window, operand 1, single buffered']
    #allocation10 [shape = 's32[1]{0}', space=sflag, size = 0x4, scoped, tag = 'scoped memory for tpu_custom_call.1']
    %21 = vsyncpa [#allocation4], 0
    %22 = vsyncpa [#allocation7], 0
    %23 = vsyncpa [#allocation5], 0
    %24 = vsyncpa [#allocation10], 0
    // Predicated region
    $region2: #{tpu_custom_call.1} parent=1 // pred_check
      _
    $region3: #{tpu_custom_call.1} parent=1 // pred_check_branch
      %26 = sbr.rel (0) target = $region5
    $region4: #{tpu_custom_call.1} parent=1 // pred_region
      _
    $region5: #{tpu_custom_call.1} parent=1 // pred_fallthru
      _
    // Predicated region
    $region6: #{tpu_custom_call.1} parent=1 // pred_check
      _
    $region7: #{tpu_custom_call.1} parent=1 // pred_check_branch
      %28 = sbr.rel (0) target = $region9
    $region8: #{tpu_custom_call.1} parent=1 // pred_region
      _
    $region9: #{tpu_custom_call.1} parent=1 // pred_fallthru
      _
    // Predicated region
    $region10: #{tpu_custom_call.1} parent=1 // pred_check
      _
    $region11: #{tpu_custom_call.1} parent=1 // pred_check_branch
      %30 = sbr.rel (0) target = $region13
    $region12: #{tpu_custom_call.1} parent=1 // pred_region
      _
    $region13: #{tpu_custom_call.1} parent=1 // pred_fallthru
      _
    // Predicated region
    $region14: #{tpu_custom_call.1} parent=1 // pred_check
      _
    $region15: #{tpu_custom_call.1} parent=1 // pred_check_branch
      %32 = sbr.rel (0) target = $region17
    $region16: #{tpu_custom_call.1} parent=1 // pred_region
      _
    $region17: #{tpu_custom_call.1} parent=1 // pred_fallthru
      _
    // Predicated region
    $region18: #{tpu_custom_call.1} parent=1 // pred_check
      _
    $region19: #{tpu_custom_call.1} parent=1 // pred_check_branch
      %34 = sbr.rel (0) target = $region21
    $region20: #{tpu_custom_call.1} parent=1 // pred_region
      %36 = vsyncadd [#allocation4], 0
      %s37 = sshll.u32 %s4, 4
      %s38 = int_to_ptr.hbm [resolvable:$true] %s37
      %s39 = sshll.u32 [#allocation3], 4
      %s40 = int_to_ptr.vmem [resolvable:$true] %s39
      %45 = dma.hbm_to_vmem [thread:$0]  %s38, 512, %s40, [#allocation4], 256, 256, 16
    $region21: #{tpu_custom_call.1} parent=1 // pred_fallthru
      _
    // Predicated region
    $region22: #{tpu_custom_call.1} parent=1 // pred_check
      _
    $region23: #{tpu_custom_call.1} parent=1 // pred_check_branch
      %47 = sbr.rel (0) target = $region25
    $region24: #{tpu_custom_call.1} parent=1 // pred_region
      _
    $region25: #{tpu_custom_call.1} parent=1 // pred_fallthru
      _
    // Predicated region
    $region26: #{tpu_custom_call.1} parent=1 // pred_check
      _
    $region27: #{tpu_custom_call.1} parent=1 // pred_check_branch
      %49 = sbr.rel (0) target = $region29
    $region28: #{tpu_custom_call.1} parent=1 // pred_region
      _
    $region29: #{tpu_custom_call.1} parent=1 // pred_fallthru
      _
    // Predicated region
    $region30: #{tpu_custom_call.1} parent=1 // pred_check
      _
    $region31: #{tpu_custom_call.1} parent=1 // pred_check_branch
      %51 = sbr.rel (0) target = $region33
    $region32: #{tpu_custom_call.1} parent=1 // pred_region
      _
    $region33: #{tpu_custom_call.1} parent=1 // pred_fallthru
      _
    // Predicated region
    $region34: #{tpu_custom_call.1} parent=1 // pred_check
      _
    $region35: #{tpu_custom_call.1} parent=1 // pred_check_branch
      %53 = sbr.rel (0) target = $region37
    $region36: #{tpu_custom_call.1} parent=1 // pred_region
      %55 = vsyncadd [#allocation7], 0
      %s56 = sshll.u32 %s8, 4
      %s57 = int_to_ptr.hbm [resolvable:$true] %s56
      %s58 = sshll.u32 [#allocation6], 4
      %s59 = int_to_ptr.vmem [resolvable:$true] %s58
      %64 = dma.hbm_to_vmem [thread:$0]  %s57, 256, %s59, [#allocation7], 128, 128, 8
    $region37: #{tpu_custom_call.1} parent=1 // pred_fallthru
      _
    // Predicated region
    $region38: #{tpu_custom_call.1} parent=1 // pred_check
      _
    $region39: #{tpu_custom_call.1} parent=1 // pred_check_branch
      %66 = sbr.rel (0) target = $region41
    $region40: #{tpu_custom_call.1} parent=1 // pred_region
      _
    $region41: #{tpu_custom_call.1} parent=1 // pred_fallthru
      _
    // Predicated region
    $region42: #{tpu_custom_call.1} parent=1 // pred_check
      _
    $region43: #{tpu_custom_call.1} parent=1 // pred_check_branch
      %68 = sbr.rel (0) target = $region45
    $region44: #{tpu_custom_call.1} parent=1 // pred_region
      _
    $region45: #{tpu_custom_call.1} parent=1 // pred_fallthru
      _
    // Predicated region
    $region46: #{tpu_custom_call.1} parent=1 // pred_check
      _
    $region47: #{tpu_custom_call.1} parent=1 // pred_check_branch
      %70 = sbr.rel (0) target = $region49
    $region48: #{tpu_custom_call.1} parent=1 // pred_region
      _
    $region49: #{tpu_custom_call.1} parent=1 // pred_fallthru
      _
    // Predicated region
    $region50: #{tpu_custom_call.1} parent=1 // pred_check
      _
    $region51: #{tpu_custom_call.1} parent=1 // pred_check_branch
      %72 = sbr.rel (0) target = $region53
    $region52: #{tpu_custom_call.1} parent=1 // pred_region
      %74 = dma.done [#allocation4], 512
    $region53: #{tpu_custom_call.1} parent=1 // pred_fallthru
      _
    // Predicated region
    $region54: #{tpu_custom_call.1} parent=1 // pred_check
      _
    $region55: #{tpu_custom_call.1} parent=1 // pred_check_branch
      %76 = sbr.rel (0) target = $region57
    $region56: #{tpu_custom_call.1} parent=1 // pred_region
      %78 = dma.done [#allocation7], 256
    $region57: #{tpu_custom_call.1} parent=1 // pred_fallthru
      _
    %v79 = vlaneseq
    %v80 = vand.u32 %v79, 127
    %v81 = vadd.s32 %v80, 128
    %vm82 = vcmp.lt.s32.totalorder %v80, 0
    %v83 = vsub.s32 0, %v80
    %v84 = vsel %vm82, %v83, %v80
    %v85 = vshrl.u32 %v84, 4
    %v86 = vand.u32 %v84, 15
    %v87 = vsub.s32 0, %v86
    %v88 = vsel %vm82, %v87, %v86
    %vm89 = vcmp.lt.s32.totalorder %v81, 0
    %v90 = vsub.s32 0, %v81
    %v91 = vsel %vm89, %v90, %v81
    %v92 = vshrl.u32 %v91, 4
    %v93 = vand.u32 %v91, 15
    %v94 = vsub.s32 0, %v93
    %v95 = vsel %vm89, %v94, %v93
    %vm96 = vcmp.ne.s32.totalorder %v88, 0
    %vm97 = vcmp.ne.s32.totalorder %v95, 0
    %vm98 = vcmp.lt.s32.totalorder %v88, 0
    %vm99 = vcmp.lt.s32.totalorder %v95, 0
    %vm100 = vmand %vm98, %vm96
    %vm101 = vmand %vm99, %vm97
    %v102 = vadd.s32 %v88, 16
    %v103 = vadd.s32 %v95, 16
    %v104 = vsel %vm100, %v102, %v88
    %v105 = vsel %vm101, %v103, %v95
    %vm106 = vcmp.ge.s32.totalorder %v80, 16
    %vm107 = vcmp.ge.s32.totalorder %v81, 16
    %vm108 = vcmp.ge.s32.totalorder %v104, 1
    %vm109 = vcmp.ge.s32.totalorder %v105, 1
    %vm110 = vmand %vm106, %vm108
    %vm111 = vmand %vm107, %vm109
    %vm112 = vcmp.le.s32.totalorder %v104, 14
    %vm113 = vcmp.le.s32.totalorder %v105, 14
    %vm114 = vmand %vm106, %vm112
    %vm115 = vmand %vm107, %vm113
    %vm116 = vcmp.lt.s32.totalorder %v80, 240
    %vm117 = vcmp.lt.s32.totalorder %v81, 240
    %vm118 = vmand %vm116, %vm108
    %vm119 = vmand %vm117, %vm109
    %vm120 = vmand %vm116, %vm112
    %vm121 = vmand %vm117, %vm113
    %v122 = vld [vmem:[%s0] sm:$0xff]
    %v123 = vld [vmem:[%s0 + $0x8] sm:$0xff]
    %v124 = vld [vmem:[%s1] sm:$0xff]
    %v125 = vld [vmem:[%s1 + $0x8] sm:$0xff]
    %v126 = vld [vmem:[%s1 + $0x10] sm:$0xff]
    %v127 = vld [vmem:[%s1 + $0x18] sm:$0xff]
    %v128 = vld [vmem:[%s5] sm:$0xff]
    %v129 = vld [vmem:[%s5 + $0x8] sm:$0xff]
    %v130 = vld [vmem:[%s5 + $0x10] sm:$0xff]
    %v131 = vld [vmem:[%s5 + $0x18] sm:$0xff]
    %v132 = vld [vmem:[%s5 + $0x20] sm:$0xff]
    %v133 = vld [vmem:[%s5 + $0x28] sm:$0xff]
    %134 = vrot.lane.b32.xlu0 %v122, 17
    %v135 = vpop.permute.xlu0 %134
    %136 = vrot.lane.b32.xlu0 %v123, 17
    %v137 = vpop.permute.xlu0 %136
    %vm138 = vcmp.lt.s32.totalorder %v80, 17
    %v139 = vsel %vm138, %v135, %v137
    %v140 = vsel %vm138, %v137, %v135
    %v141 = vsel %vm110, 1, 0
    %v142 = vsel %vm111, 1, 0
    %vm143 = vcmp.eq.s32.totalorder %v141, 1
    %vm144 = vcmp.eq.s32.totalorder %v142, 1
    %v145 = vsel %vm143, %v140, 0.0
    %v146 = vsel %vm144, %v139, 0.0
    %147 = vrot.lane.b32.xlu0 %v122, 16
    %v148 = vpop.permute.xlu0 %147
    %149 = vrot.lane.b32.xlu0 %v123, 16
    %v150 = vpop.permute.xlu0 %149
    %vm151 = vcmp.lt.s32.totalorder %v80, 16
    %v152 = vsel %vm151, %v148, %v150
    %v153 = vsel %vm151, %v150, %v148
    %v154 = vsel %vm106, 1, 0
    %v155 = vsel %vm107, 1, 0
    %vm156 = vcmp.eq.s32.totalorder %v154, 1
    %vm157 = vcmp.eq.s32.totalorder %v155, 1
    %v158 = vsel %vm156, %v153, 0.0
    %v159 = vsel %vm157, %v152, 0.0
    %160 = vrot.lane.b32.xlu0 %v122, 15
    %v161 = vpop.permute.xlu0 %160
    %162 = vrot.lane.b32.xlu0 %v123, 15
    %v163 = vpop.permute.xlu0 %162
    %vm164 = vcmp.lt.s32.totalorder %v80, 15
    %v165 = vsel %vm164, %v161, %v163
    %v166 = vsel %vm164, %v163, %v161
    %v167 = vsel %vm114, 1, 0
    %v168 = vsel %vm115, 1, 0
    %vm169 = vcmp.eq.s32.totalorder %v167, 1
    %vm170 = vcmp.eq.s32.totalorder %v168, 1
    %v171 = vsel %vm169, %v166, 0.0
    %v172 = vsel %vm170, %v165, 0.0
    %173 = vrot.lane.b32.xlu0 %v122, 1
    %v174 = vpop.permute.xlu0 %173
    %175 = vrot.lane.b32.xlu0 %v123, 1
    %v176 = vpop.permute.xlu0 %175
    %vm177 = vcmp.lt.s32.totalorder %v80, 1
    %v178 = vsel %vm177, %v174, %v176
    %v179 = vsel %vm177, %v176, %v174
    %v180 = vsel %vm108, 1, 0
    %v181 = vsel %vm109, 1, 0
    %vm182 = vcmp.eq.s32.totalorder %v180, 1
    %vm183 = vcmp.eq.s32.totalorder %v181, 1
    %v184 = vsel %vm182, %v179, 0.0
    %v185 = vsel %vm183, %v178, 0.0
    %186 = vrot.lane.b32.xlu0 %v122, 127
    %v187 = vpop.permute.xlu0 %186
    %188 = vrot.lane.b32.xlu0 %v123, 127
    %v189 = vpop.permute.xlu0 %188
    %vm190 = vcmp.lt.s32.totalorder %v80, 127
    %v191 = vsel %vm190, %v187, %v189
    %v192 = vsel %vm190, %v189, %v187
    %v193 = vsel %vm112, 1, 0
    %v194 = vsel %vm113, 1, 0
    %vm195 = vcmp.eq.s32.totalorder %v193, 1
    %vm196 = vcmp.eq.s32.totalorder %v194, 1
    %v197 = vsel %vm195, %v191, 0.0
    %v198 = vsel %vm196, %v192, 0.0
    %199 = vrot.lane.b32.xlu0 %v122, 113
    %v200 = vpop.permute.xlu0 %199
    %201 = vrot.lane.b32.xlu0 %v123, 113
    %v202 = vpop.permute.xlu0 %201
    %vm203 = vcmp.lt.s32.totalorder %v80, 113
    %v204 = vsel %vm203, %v200, %v202
    %v205 = vsel %vm203, %v202, %v200
    %v206 = vsel %vm118, 1, 0
    %v207 = vsel %vm119, 1, 0
    %vm208 = vcmp.eq.s32.totalorder %v206, 1
    %vm209 = vcmp.eq.s32.totalorder %v207, 1
    %v210 = vsel %vm208, %v204, 0.0
    %v211 = vsel %vm209, %v205, 0.0
    %212 = vrot.lane.b32.xlu0 %v122, 112
    %v213 = vpop.permute.xlu0 %212
    %214 = vrot.lane.b32.xlu0 %v123, 112
    %v215 = vpop.permute.xlu0 %214
    %vm216 = vcmp.lt.s32.totalorder %v80, 112
    %v217 = vsel %vm216, %v213, %v215
    %v218 = vsel %vm216, %v215, %v213
    %v219 = vsel %vm116, 1, 0
    %v220 = vsel %vm117, 1, 0
    %vm221 = vcmp.eq.s32.totalorder %v219, 1
    %vm222 = vcmp.eq.s32.totalorder %v220, 1
    %v223 = vsel %vm221, %v217, 0.0
    %v224 = vsel %vm222, %v218, 0.0
    %225 = vrot.lane.b32.xlu0 %v122, 111
    %v226 = vpop.permute.xlu0 %225
    %227 = vrot.lane.b32.xlu0 %v123, 111
    %v228 = vpop.permute.xlu0 %227
    %vm229 = vcmp.lt.s32.totalorder %v80, 111
    %v230 = vsel %vm229, %v226, %v228
    %v231 = vsel %vm229, %v228, %v226
    %v232 = vsel %vm120, 1, 0
    %v233 = vsel %vm121, 1, 0
    %vm234 = vcmp.eq.s32.totalorder %v232, 1
    %vm235 = vcmp.eq.s32.totalorder %v233, 1
    %v236 = vsel %vm234, %v230, 0.0
    %v237 = vsel %vm235, %v231, 0.0
    %238 = vrot.lane.b32.xlu0 %v124, 17
    %v239 = vpop.permute.xlu0 %238
    %240 = vrot.lane.b32.xlu0 %v126, 17
    %v241 = vpop.permute.xlu0 %240
    %242 = vrot.lane.b32.xlu0 %v125, 17
    %v243 = vpop.permute.xlu0 %242
    %244 = vrot.lane.b32.xlu0 %v127, 17
    %v245 = vpop.permute.xlu0 %244
    %v246 = vsel %vm138, %v239, %v243
    %v247 = vsel %vm138, %v241, %v245
    %v248 = vsel %vm138, %v243, %v239
    %v249 = vsel %vm138, %v245, %v241
    %v250 = vsel %vm143, %v248, 0.0
    %v251 = vsel %vm144, %v246, 0.0
    %v252 = vsel %vm143, %v249, 0.0
    %v253 = vsel %vm144, %v247, 0.0
    %254 = vrot.lane.b32.xlu0 %v124, 16
    %v255 = vpop.permute.xlu0 %254
    %256 = vrot.lane.b32.xlu0 %v126, 16
    %v257 = vpop.permute.xlu0 %256
    %258 = vrot.lane.b32.xlu0 %v125, 16
    %v259 = vpop.permute.xlu0 %258
    %260 = vrot.lane.b32.xlu0 %v127, 16
    %v261 = vpop.permute.xlu0 %260
    %v262 = vsel %vm151, %v255, %v259
    %v263 = vsel %vm151, %v257, %v261
    %v264 = vsel %vm151, %v259, %v255
    %v265 = vsel %vm151, %v261, %v257
    %v266 = vsel %vm156, %v264, 0.0
    %v267 = vsel %vm157, %v262, 0.0
    %v268 = vsel %vm156, %v265, 0.0
    %v269 = vsel %vm157, %v263, 0.0
    %270 = vrot.lane.b32.xlu0 %v124, 15
    %v271 = vpop.permute.xlu0 %270
    %272 = vrot.lane.b32.xlu0 %v126, 15
    %v273 = vpop.permute.xlu0 %272
    %274 = vrot.lane.b32.xlu0 %v125, 15
    %v275 = vpop.permute.xlu0 %274
    %276 = vrot.lane.b32.xlu0 %v127, 15
    %v277 = vpop.permute.xlu0 %276
    %v278 = vsel %vm164, %v271, %v275
    %v279 = vsel %vm164, %v273, %v277
    %v280 = vsel %vm164, %v275, %v271
    %v281 = vsel %vm164, %v277, %v273
    %v282 = vsel %vm169, %v280, 0.0
    %v283 = vsel %vm170, %v278, 0.0
    %v284 = vsel %vm169, %v281, 0.0
    %v285 = vsel %vm170, %v279, 0.0
    %286 = vrot.lane.b32.xlu0 %v124, 1
    %v287 = vpop.permute.xlu0 %286
    %288 = vrot.lane.b32.xlu0 %v126, 1
    %v289 = vpop.permute.xlu0 %288
    %290 = vrot.lane.b32.xlu0 %v125, 1
    %v291 = vpop.permute.xlu0 %290
    %292 = vrot.lane.b32.xlu0 %v127, 1
    %v293 = vpop.permute.xlu0 %292
    %v294 = vsel %vm177, %v287, %v291
    %v295 = vsel %vm177, %v289, %v293
    %v296 = vsel %vm177, %v291, %v287
    %v297 = vsel %vm177, %v293, %v289
    %v298 = vsel %vm182, %v296, 0.0
    %v299 = vsel %vm183, %v294, 0.0
    %v300 = vsel %vm182, %v297, 0.0
    %v301 = vsel %vm183, %v295, 0.0
    %302 = vrot.lane.b32.xlu0 %v124, 127
    %v303 = vpop.permute.xlu0 %302
    %304 = vrot.lane.b32.xlu0 %v126, 127
    %v305 = vpop.permute.xlu0 %304
    %306 = vrot.lane.b32.xlu0 %v125, 127
    %v307 = vpop.permute.xlu0 %306
    %308 = vrot.lane.b32.xlu0 %v127, 127
    %v309 = vpop.permute.xlu0 %308
    %v310 = vsel %vm190, %v303, %v307
    %v311 = vsel %vm190, %v305, %v309
    %v312 = vsel %vm190, %v307, %v303
    %v313 = vsel %vm190, %v309, %v305
    %v314 = vsel %vm195, %v310, 0.0
    %v315 = vsel %vm196, %v312, 0.0
    %v316 = vsel %vm195, %v311, 0.0
    %v317 = vsel %vm196, %v313, 0.0
    %318 = vrot.lane.b32.xlu0 %v124, 113
    %v319 = vpop.permute.xlu0 %318
    %320 = vrot.lane.b32.xlu0 %v126, 113
    %v321 = vpop.permute.xlu0 %320
    %322 = vrot.lane.b32.xlu0 %v125, 113
    %v323 = vpop.permute.xlu0 %322
    %324 = vrot.lane.b32.xlu0 %v127, 113
    %v325 = vpop.permute.xlu0 %324
    %v326 = vsel %vm203, %v319, %v323
    %v327 = vsel %vm203, %v321, %v325
    %v328 = vsel %vm203, %v323, %v319
    %v329 = vsel %vm203, %v325, %v321
    %v330 = vsel %vm208, %v326, 0.0
    %v331 = vsel %vm209, %v328, 0.0
    %v332 = vsel %vm208, %v327, 0.0
    %v333 = vsel %vm209, %v329, 0.0
    %334 = vrot.lane.b32.xlu0 %v124, 112
    %v335 = vpop.permute.xlu0 %334
    %336 = vrot.lane.b32.xlu0 %v126, 112
    %v337 = vpop.permute.xlu0 %336
    %338 = vrot.lane.b32.xlu0 %v125, 112
    %v339 = vpop.permute.xlu0 %338
    %340 = vrot.lane.b32.xlu0 %v127, 112
    %v341 = vpop.permute.xlu0 %340
    %v342 = vsel %vm216, %v335, %v339
    %v343 = vsel %vm216, %v337, %v341
    %v344 = vsel %vm216, %v339, %v335
    %v345 = vsel %vm216, %v341, %v337
    %v346 = vsel %vm221, %v342, 0.0
    %v347 = vsel %vm222, %v344, 0.0
    %v348 = vsel %vm221, %v343, 0.0
    %v349 = vsel %vm222, %v345, 0.0
    %350 = vrot.lane.b32.xlu0 %v124, 111
    %v351 = vpop.permute.xlu0 %350
    %352 = vrot.lane.b32.xlu0 %v126, 111
    %v353 = vpop.permute.xlu0 %352
    %354 = vrot.lane.b32.xlu0 %v125, 111
    %v355 = vpop.permute.xlu0 %354
    %356 = vrot.lane.b32.xlu0 %v127, 111
    %v357 = vpop.permute.xlu0 %356
    %v358 = vsel %vm229, %v351, %v355
    %v359 = vsel %vm229, %v353, %v357
    %v360 = vsel %vm229, %v355, %v351
    %v361 = vsel %vm229, %v357, %v353
    %v362 = vsel %vm234, %v358, 0.0
    %v363 = vsel %vm235, %v360, 0.0
    %v364 = vsel %vm234, %v359, 0.0
    %v365 = vsel %vm235, %v361, 0.0
    %v366 = vld [vmem:[%s2] sm:$0xff]
    %v367 = vld [vmem:[%s2 + $0x8] sm:$0xff]
    %v368 = vld [vmem:[%s2 + $0x10] sm:$0xff]
    %v369 = vld [vmem:[%s2 + $0x18] sm:$0xff]
    %v370 = vld [vmem:[%s2 + $0x20] sm:$0xff]
    %v371 = vld [vmem:[%s2 + $0x28] sm:$0xff]
    %vm372 = vcmask 588800
    %v374 = vsel %vm372, %v366, 0
    %v377 = vsel %vm372, %v367, 0
    %v380 = vsel %vm372, %v368, 0
    %v383 = vsel %vm372, %v369, 0
    %v386 = vsel %vm372, %v370, 0
    %v389 = vsel %vm372, %v371, 0
    %391 = vmatpush.msra.mxu0 0.0
    %392 = vmatpush.msra.mxu0 0.0
    %393 = vmatpush.msra.mxu0 0.0
    %394 = vmatpush.msra.mxu0 0.0
    %395 = vmatpush.msra.mxu0 0.0
    %396 = vmatpush.msra.mxu0 0.0
    %397 = vmatpush.msra.mxu0 0.0
    %398 = vmatpush.msra.mxu0 %v236
    %399 = vmatpush.msra.mxu0 %v223
    %400 = vmatpush.msra.mxu0 %v210
    %401 = vmatpush.msra.mxu0 %v197
    %402 = vmatpush.msra.mxu0 %v122
    %403 = vmatpush.msra.mxu0 %v184
    %404 = vmatpush.msra.mxu0 %v171
    %405 = vmatpush.msra.mxu0 %v158
    %406 = vmatpush.msra.mxu0 %v145
    %407 = vmatmul.f32.gmra.mxu0 %v374
    %v408 = vpop.f32.mrf.mxu0
    %v409 = vadd.f32 0.0, %v408
    %410 = vmatmul.f32.gmra.mxu0 %v377
    %v411 = vpop.f32.mrf.mxu0
    %v412 = vadd.f32 0.0, %v411
    %413 = vmatmul.f32.gmra.mxu0 %v380
    %v414 = vpop.f32.mrf.mxu0
    %v415 = vadd.f32 0.0, %v414
    %416 = vmatmul.f32.gmra.mxu0 %v383
    %v417 = vpop.f32.mrf.mxu0
    %v418 = vadd.f32 0.0, %v417
    %419 = vmatmul.f32.gmra.mxu0 %v386
    %v420 = vpop.f32.mrf.mxu0
    %v421 = vadd.f32 0.0, %v420
    %422 = vmatmul.f32.gmra.mxu0 %v389
    %v423 = vpop.f32.mrf.mxu0
    %v424 = vadd.f32 0.0, %v423
    %425 = vdwg.mxu0
    %426 = vmatpush.msra.mxu0 0.0
    %427 = vmatpush.msra.mxu0 0.0
    %428 = vmatpush.msra.mxu0 0.0
    %429 = vmatpush.msra.mxu0 0.0
    %430 = vmatpush.msra.mxu0 0.0
    %431 = vmatpush.msra.mxu0 0.0
    %432 = vmatpush.msra.mxu0 0.0
    %433 = vmatpush.msra.mxu0 %v237
    %434 = vmatpush.msra.mxu0 %v224
    %435 = vmatpush.msra.mxu0 %v211
    %436 = vmatpush.msra.mxu0 %v198
    %437 = vmatpush.msra.mxu0 %v123
    %438 = vmatpush.msra.mxu0 %v185
    %439 = vmatpush.msra.mxu0 %v172
    %440 = vmatpush.msra.mxu0 %v159
    %441 = vmatpush.msra.mxu0 %v146
    %442 = vmatmul.f32.gmra.mxu0 %v374
    %v443 = vpop.f32.mrf.mxu0
    %v444 = vadd.f32 0.0, %v443
    %445 = vmatmul.f32.gmra.mxu0 %v377
    %v446 = vpop.f32.mrf.mxu0
    %v447 = vadd.f32 0.0, %v446
    %448 = vmatmul.f32.gmra.mxu0 %v380
    %v449 = vpop.f32.mrf.mxu0
    %v450 = vadd.f32 0.0, %v449
    %451 = vmatmul.f32.gmra.mxu0 %v383
    %v452 = vpop.f32.mrf.mxu0
    %v453 = vadd.f32 0.0, %v452
    %454 = vmatmul.f32.gmra.mxu0 %v386
    %v455 = vpop.f32.mrf.mxu0
    %v456 = vadd.f32 0.0, %v455
    %457 = vmatmul.f32.gmra.mxu0 %v389
    %v458 = vpop.f32.mrf.mxu0
    %v459 = vadd.f32 0.0, %v458
    %460 = vdwg.mxu0
    %v461 = vld [vmem:[%s3] sm:$0xff]
    %v462 = vld [vmem:[%s3 + $0x8] sm:$0xff]
    %v463 = vld [vmem:[%s3 + $0x10] sm:$0xff]
    %v464 = vld [vmem:[%s3 + $0x18] sm:$0xff]
    %v465 = vld [vmem:[%s3 + $0x20] sm:$0xff]
    %v466 = vld [vmem:[%s3 + $0x28] sm:$0xff]
    %v467 = vld [vmem:[%s3 + $0x30] sm:$0xff]
    %v468 = vld [vmem:[%s3 + $0x38] sm:$0xff]
    %vm469 = vcmask 130048
    %v471 = vsel %vm469, %v462, 0
    %v474 = vsel %vm469, %v464, 0
    %v477 = vsel %vm469, %v466, 0
    %v480 = vsel %vm469, %v468, 0
    %482 = vmatpush.msra.mxu0 %v348
    %483 = vmatpush.msra.mxu0 %v346
    %484 = vmatpush.msra.mxu0 %v332
    %485 = vmatpush.msra.mxu0 %v330
    %486 = vmatpush.msra.mxu0 %v316
    %487 = vmatpush.msra.mxu0 %v314
    %488 = vmatpush.msra.mxu0 %v126
    %489 = vmatpush.msra.mxu0 %v124
    %490 = vmatpush.msra.mxu0 %v300
    %491 = vmatpush.msra.mxu0 %v298
    %492 = vmatpush.msra.mxu0 %v284
    %493 = vmatpush.msra.mxu0 %v282
    %494 = vmatpush.msra.mxu0 %v268
    %495 = vmatpush.msra.mxu0 %v266
    %496 = vmatpush.msra.mxu0 %v252
    %497 = vmatpush.msra.mxu0 %v250
    %498 = vmatmul.f32.gmra.mxu0 %v461
    %v499 = vpop.f32.mrf.mxu0
    %v500 = vadd.f32 0.0, %v499
    %501 = vmatmul.f32.gmra.mxu0 %v463
    %v502 = vpop.f32.mrf.mxu0
    %v503 = vadd.f32 0.0, %v502
    %504 = vmatmul.f32.gmra.mxu0 %v465
    %v505 = vpop.f32.mrf.mxu0
    %v506 = vadd.f32 0.0, %v505
    %507 = vmatmul.f32.gmra.mxu0 %v467
    %v508 = vpop.f32.mrf.mxu0
    %v509 = vadd.f32 0.0, %v508
    %510 = vdwg.mxu0
    %511 = vmatpush.msra.mxu0 0.0
    %512 = vmatpush.msra.mxu0 0.0
    %513 = vmatpush.msra.mxu0 0.0
    %514 = vmatpush.msra.mxu0 0.0
    %515 = vmatpush.msra.mxu0 0.0
    %516 = vmatpush.msra.mxu0 0.0
    %517 = vmatpush.msra.mxu0 0.0
    %518 = vmatpush.msra.mxu0 0.0
    %519 = vmatpush.msra.mxu0 0.0
    %520 = vmatpush.msra.mxu0 0.0
    %521 = vmatpush.msra.mxu0 0.0
    %522 = vmatpush.msra.mxu0 0.0
    %523 = vmatpush.msra.mxu0 0.0
    %524 = vmatpush.msra.mxu0 0.0
    %525 = vmatpush.msra.mxu0 %v364
    %526 = vmatpush.msra.mxu0 %v362
    %527 = vmatmul.f32.gmra.mxu0 %v471
    %v528 = vpop.f32.mrf.mxu0
    %v529 = vadd.f32 %v500, %v528
    %530 = vmatmul.f32.gmra.mxu0 %v474
    %v531 = vpop.f32.mrf.mxu0
    %v532 = vadd.f32 %v503, %v531
    %533 = vmatmul.f32.gmra.mxu0 %v477
    %v534 = vpop.f32.mrf.mxu0
    %v535 = vadd.f32 %v506, %v534
    %536 = vmatmul.f32.gmra.mxu0 %v480
    %v537 = vpop.f32.mrf.mxu0
    %v538 = vadd.f32 %v509, %v537
    %539 = vdwg.mxu0
    %540 = vmatpush.msra.mxu0 %v349
    %541 = vmatpush.msra.mxu0 %v347
    %542 = vmatpush.msra.mxu0 %v333
    %543 = vmatpush.msra.mxu0 %v331
    %544 = vmatpush.msra.mxu0 %v317
    %545 = vmatpush.msra.mxu0 %v315
    %546 = vmatpush.msra.mxu0 %v127
    %547 = vmatpush.msra.mxu0 %v125
    %548 = vmatpush.msra.mxu0 %v301
    %549 = vmatpush.msra.mxu0 %v299
    %550 = vmatpush.msra.mxu0 %v285
    %551 = vmatpush.msra.mxu0 %v283
    %552 = vmatpush.msra.mxu0 %v269
    %553 = vmatpush.msra.mxu0 %v267
    %554 = vmatpush.msra.mxu0 %v253
    %555 = vmatpush.msra.mxu0 %v251
    %556 = vmatmul.f32.gmra.mxu0 %v461
    %v557 = vpop.f32.mrf.mxu0
    %v558 = vadd.f32 0.0, %v557
    %559 = vmatmul.f32.gmra.mxu0 %v463
    %v560 = vpop.f32.mrf.mxu0
    %v561 = vadd.f32 0.0, %v560
    %562 = vmatmul.f32.gmra.mxu0 %v465
    %v563 = vpop.f32.mrf.mxu0
    %v564 = vadd.f32 0.0, %v563
    %565 = vmatmul.f32.gmra.mxu0 %v467
    %v566 = vpop.f32.mrf.mxu0
    %v567 = vadd.f32 0.0, %v566
    %568 = vdwg.mxu0
    %569 = vmatpush.msra.mxu0 0.0
    %570 = vmatpush.msra.mxu0 0.0
    %571 = vmatpush.msra.mxu0 0.0
    %572 = vmatpush.msra.mxu0 0.0
    %573 = vmatpush.msra.mxu0 0.0
    %574 = vmatpush.msra.mxu0 0.0
    %575 = vmatpush.msra.mxu0 0.0
    %576 = vmatpush.msra.mxu0 0.0
    %577 = vmatpush.msra.mxu0 0.0
    %578 = vmatpush.msra.mxu0 0.0
    %579 = vmatpush.msra.mxu0 0.0
    %580 = vmatpush.msra.mxu0 0.0
    %581 = vmatpush.msra.mxu0 0.0
    %582 = vmatpush.msra.mxu0 0.0
    %583 = vmatpush.msra.mxu0 %v365
    %584 = vmatpush.msra.mxu0 %v363
    %585 = vmatmul.f32.gmra.mxu0 %v471
    %v586 = vpop.f32.mrf.mxu0
    %v587 = vadd.f32 %v558, %v586
    %588 = vmatmul.f32.gmra.mxu0 %v474
    %v589 = vpop.f32.mrf.mxu0
    %v590 = vadd.f32 %v561, %v589
    %591 = vmatmul.f32.gmra.mxu0 %v477
    %v592 = vpop.f32.mrf.mxu0
    %v593 = vadd.f32 %v564, %v592
    %594 = vmatmul.f32.gmra.mxu0 %v480
    %v595 = vpop.f32.mrf.mxu0
    %v596 = vadd.f32 %v567, %v595
    %597 = vdwg.mxu0
    %v598 = vadd.f32 %v529, %v409
    %v599 = vadd.f32 %v587, %v444
    %v600 = vadd.f32 %v532, %v412
    %v601 = vadd.f32 %v590, %v447
    %603 = vset.pattern.permute.xlu0 0
    %604 = vperm.xlu0 %603, %v128
    %v605 = vpop.permute.xlu0 %604
    %608 = vset.pattern.permute.xlu0 0
    %609 = vperm.xlu0 %608, %v129
    %v610 = vpop.permute.xlu0 %609
    %v612 = vadd.f32 %v598, %v605
    %v613 = vadd.f32 %v599, %v605
    %v614 = vadd.f32 %v600, %v610
    %v615 = vadd.f32 %v601, %v610
    %v616 = vxor.u32 %v612, 2147483648
    %v617 = vxor.u32 %v613, 2147483648
    %v618 = vxor.u32 %v614, 2147483648
    %v619 = vxor.u32 %v615, 2147483648
    %v620 = vmul.f32 %v616, 1.442695
    %v621 = vpow.pop %v620
    %v622 = vmul.f32 %v617, 1.442695
    %v623 = vpow.pop %v622
    %v624 = vmul.f32 %v618, 1.442695
    %v625 = vpow.pop %v624
    %v626 = vmul.f32 %v619, 1.442695
    %v627 = vpow.pop %v626
    %v628 = vadd.f32 %v621, 1.0
    %v629 = vadd.f32 %v623, 1.0
    %v630 = vadd.f32 %v625, 1.0
    %v631 = vadd.f32 %v627, 1.0
    %v632 = vrcp.pop %v628
    %v633 = vmul.f32 %v628, %v632
    %v634 = vsub.f32 1.0, %v633
    %v635 = vmul.f32 %v632, %v634
    %v636 = vadd.f32 %v632, %v635
    %vm637 = vweird.f32 %v628
    %vm638 = vweird.f32 %v632
    %vm639 = vmor %vm637, %vm638
    %v640 = vsel %vm639, %v632, %v636
    %v641 = vand.u32 2147483647, %v628
    %vm642 = vcmp.eq.f32.partialorder %v641, 8.507059e+37
    %v643 = vand.u32 %v628, 2147483648
    %v644 = vor.u32 1.1754944e-38, %v643
    %v645 = vsel %vm642, %v644, %v640
    %v646 = vmul.f32 1.0, %v645
    %v647 = vrcp.pop %v629
    %v648 = vmul.f32 %v629, %v647
    %v649 = vsub.f32 1.0, %v648
    %v650 = vmul.f32 %v647, %v649
    %v651 = vadd.f32 %v647, %v650
    %vm652 = vweird.f32 %v629
    %vm653 = vweird.f32 %v647
    %vm654 = vmor %vm652, %vm653
    %v655 = vsel %vm654, %v647, %v651
    %v656 = vand.u32 2147483647, %v629
    %vm657 = vcmp.eq.f32.partialorder %v656, 8.507059e+37
    %v658 = vand.u32 %v629, 2147483648
    %v659 = vor.u32 1.1754944e-38, %v658
    %v660 = vsel %vm657, %v659, %v655
    %v661 = vmul.f32 1.0, %v660
    %v662 = vrcp.pop %v630
    %v663 = vmul.f32 %v630, %v662
    %v664 = vsub.f32 1.0, %v663
    %v665 = vmul.f32 %v662, %v664
    %v666 = vadd.f32 %v662, %v665
    %vm667 = vweird.f32 %v630
    %vm668 = vweird.f32 %v662
    %vm669 = vmor %vm667, %vm668
    %v670 = vsel %vm669, %v662, %v666
    %v671 = vand.u32 2147483647, %v630
    %vm672 = vcmp.eq.f32.partialorder %v671, 8.507059e+37
    %v673 = vand.u32 %v630, 2147483648
    %v674 = vor.u32 1.1754944e-38, %v673
    %v675 = vsel %vm672, %v674, %v670
    %v676 = vmul.f32 1.0, %v675
    %v677 = vrcp.pop %v631
    %v678 = vmul.f32 %v631, %v677
    %v679 = vsub.f32 1.0, %v678
    %v680 = vmul.f32 %v677, %v679
    %v681 = vadd.f32 %v677, %v680
    %vm682 = vweird.f32 %v631
    %vm683 = vweird.f32 %v677
    %vm684 = vmor %vm682, %vm683
    %v685 = vsel %vm684, %v677, %v681
    %v686 = vand.u32 2147483647, %v631
    %vm687 = vcmp.eq.f32.partialorder %v686, 8.507059e+37
    %v688 = vand.u32 %v631, 2147483648
    %v689 = vor.u32 1.1754944e-38, %v688
    %v690 = vsel %vm687, %v689, %v685
    %v691 = vmul.f32 1.0, %v690
    %v692 = vadd.f32 %v535, %v415
    %v693 = vadd.f32 %v593, %v450
    %v694 = vadd.f32 %v538, %v418
    %v695 = vadd.f32 %v596, %v453
    %697 = vset.pattern.permute.xlu0 0
    %698 = vperm.xlu0 %697, %v130
    %v699 = vpop.permute.xlu0 %698
    %702 = vset.pattern.permute.xlu0 0
    %703 = vperm.xlu0 %702, %v131
    %v704 = vpop.permute.xlu0 %703
    %v706 = vadd.f32 %v692, %v699
    %v707 = vadd.f32 %v693, %v699
    %v708 = vadd.f32 %v694, %v704
    %v709 = vadd.f32 %v695, %v704
    %v710 = vxor.u32 %v706, 2147483648
    %v711 = vxor.u32 %v707, 2147483648
    %v712 = vxor.u32 %v708, 2147483648
    %v713 = vxor.u32 %v709, 2147483648
    %v714 = vmul.f32 %v710, 1.442695
    %v715 = vpow.pop %v714
    %v716 = vmul.f32 %v711, 1.442695
    %v717 = vpow.pop %v716
    %v718 = vmul.f32 %v712, 1.442695
    %v719 = vpow.pop %v718
    %v720 = vmul.f32 %v713, 1.442695
    %v721 = vpow.pop %v720
    %v722 = vadd.f32 %v715, 1.0
    %v723 = vadd.f32 %v717, 1.0
    %v724 = vadd.f32 %v719, 1.0
    %v725 = vadd.f32 %v721, 1.0
    %v726 = vrcp.pop %v722
    %v727 = vmul.f32 %v722, %v726
    %v728 = vsub.f32 1.0, %v727
    %v729 = vmul.f32 %v726, %v728
    %v730 = vadd.f32 %v726, %v729
    %vm731 = vweird.f32 %v722
    %vm732 = vweird.f32 %v726
    %vm733 = vmor %vm731, %vm732
    %v734 = vsel %vm733, %v726, %v730
    %v735 = vand.u32 2147483647, %v722
    %vm736 = vcmp.eq.f32.partialorder %v735, 8.507059e+37
    %v737 = vand.u32 %v722, 2147483648
    %v738 = vor.u32 1.1754944e-38, %v737
    %v739 = vsel %vm736, %v738, %v734
    %v740 = vmul.f32 1.0, %v739
    %v741 = vrcp.pop %v723
    %v742 = vmul.f32 %v723, %v741
    %v743 = vsub.f32 1.0, %v742
    %v744 = vmul.f32 %v741, %v743
    %v745 = vadd.f32 %v741, %v744
    %vm746 = vweird.f32 %v723
    %vm747 = vweird.f32 %v741
    %vm748 = vmor %vm746, %vm747
    %v749 = vsel %vm748, %v741, %v745
    %v750 = vand.u32 2147483647, %v723
    %vm751 = vcmp.eq.f32.partialorder %v750, 8.507059e+37
    %v752 = vand.u32 %v723, 2147483648
    %v753 = vor.u32 1.1754944e-38, %v752
    %v754 = vsel %vm751, %v753, %v749
    %v755 = vmul.f32 1.0, %v754
    %v756 = vrcp.pop %v724
    %v757 = vmul.f32 %v724, %v756
    %v758 = vsub.f32 1.0, %v757
    %v759 = vmul.f32 %v756, %v758
    %v760 = vadd.f32 %v756, %v759
    %vm761 = vweird.f32 %v724
    %vm762 = vweird.f32 %v756
    %vm763 = vmor %vm761, %vm762
    %v764 = vsel %vm763, %v756, %v760
    %v765 = vand.u32 2147483647, %v724
    %vm766 = vcmp.eq.f32.partialorder %v765, 8.507059e+37
    %v767 = vand.u32 %v724, 2147483648
    %v768 = vor.u32 1.1754944e-38, %v767
    %v769 = vsel %vm766, %v768, %v764
    %v770 = vmul.f32 1.0, %v769
    %v771 = vrcp.pop %v725
    %v772 = vmul.f32 %v725, %v771
    %v773 = vsub.f32 1.0, %v772
    %v774 = vmul.f32 %v771, %v773
    %v775 = vadd.f32 %v771, %v774
    %vm776 = vweird.f32 %v725
    %vm777 = vweird.f32 %v771
    %vm778 = vmor %vm776, %vm777
    %v779 = vsel %vm778, %v771, %v775
    %v780 = vand.u32 2147483647, %v725
    %vm781 = vcmp.eq.f32.partialorder %v780, 8.507059e+37
    %v782 = vand.u32 %v725, 2147483648
    %v783 = vor.u32 1.1754944e-38, %v782
    %v784 = vsel %vm781, %v783, %v779
    %v785 = vmul.f32 1.0, %v784
    %v786 = vld [vmem:[#allocation3] sm:$0xff]
    %v787 = vld [vmem:[#allocation3 + $0x8] sm:$0xff]
    %v788 = vld [vmem:[#allocation3 + $0x10] sm:$0xff]
    %v789 = vld [vmem:[#allocation3 + $0x18] sm:$0xff]
    %v790 = vmul.f32 %v740, %v124
    %v791 = vmul.f32 %v755, %v125
    %v792 = vmul.f32 %v770, %v126
    %v793 = vmul.f32 %v785, %v127
    %794 = vrot.lane.b32.xlu0 %v790, 17
    %v795 = vpop.permute.xlu0 %794
    %796 = vrot.lane.b32.xlu0 %v792, 17
    %v797 = vpop.permute.xlu0 %796
    %798 = vrot.lane.b32.xlu0 %v791, 17
    %v799 = vpop.permute.xlu0 %798
    %800 = vrot.lane.b32.xlu0 %v793, 17
    %v801 = vpop.permute.xlu0 %800
    %v802 = vsel %vm138, %v795, %v799
    %v803 = vsel %vm138, %v797, %v801
    %v804 = vsel %vm138, %v799, %v795
    %v805 = vsel %vm138, %v801, %v797
    %v806 = vsel %vm143, %v804, 0.0
    %v807 = vsel %vm144, %v802, 0.0
    %v808 = vsel %vm143, %v805, 0.0
    %v809 = vsel %vm144, %v803, 0.0
    %810 = vrot.lane.b32.xlu0 %v790, 16
    %v811 = vpop.permute.xlu0 %810
    %812 = vrot.lane.b32.xlu0 %v792, 16
    %v813 = vpop.permute.xlu0 %812
    %814 = vrot.lane.b32.xlu0 %v791, 16
    %v815 = vpop.permute.xlu0 %814
    %816 = vrot.lane.b32.xlu0 %v793, 16
    %v817 = vpop.permute.xlu0 %816
    %v818 = vsel %vm151, %v811, %v815
    %v819 = vsel %vm151, %v813, %v817
    %v820 = vsel %vm151, %v815, %v811
    %v821 = vsel %vm151, %v817, %v813
    %v822 = vsel %vm156, %v820, 0.0
    %v823 = vsel %vm157, %v818, 0.0
    %v824 = vsel %vm156, %v821, 0.0
    %v825 = vsel %vm157, %v819, 0.0
    %826 = vrot.lane.b32.xlu0 %v790, 15
    %v827 = vpop.permute.xlu0 %826
    %828 = vrot.lane.b32.xlu0 %v792, 15
    %v829 = vpop.permute.xlu0 %828
    %830 = vrot.lane.b32.xlu0 %v791, 15
    %v831 = vpop.permute.xlu0 %830
    %832 = vrot.lane.b32.xlu0 %v793, 15
    %v833 = vpop.permute.xlu0 %832
    %v834 = vsel %vm164, %v827, %v831
    %v835 = vsel %vm164, %v829, %v833
    %v836 = vsel %vm164, %v831, %v827
    %v837 = vsel %vm164, %v833, %v829
    %v838 = vsel %vm169, %v836, 0.0
    %v839 = vsel %vm170, %v834, 0.0
    %v840 = vsel %vm169, %v837, 0.0
    %v841 = vsel %vm170, %v835, 0.0
    %842 = vrot.lane.b32.xlu0 %v790, 1
    %v843 = vpop.permute.xlu0 %842
    %844 = vrot.lane.b32.xlu0 %v792, 1
    %v845 = vpop.permute.xlu0 %844
    %846 = vrot.lane.b32.xlu0 %v791, 1
    %v847 = vpop.permute.xlu0 %846
    %848 = vrot.lane.b32.xlu0 %v793, 1
    %v849 = vpop.permute.xlu0 %848
    %v850 = vsel %vm177, %v843, %v847
    %v851 = vsel %vm177, %v845, %v849
    %v852 = vsel %vm177, %v847, %v843
    %v853 = vsel %vm177, %v849, %v845
    %v854 = vsel %vm182, %v852, 0.0
    %v855 = vsel %vm183, %v850, 0.0
    %v856 = vsel %vm182, %v853, 0.0
    %v857 = vsel %vm183, %v851, 0.0
    %858 = vrot.lane.b32.xlu0 %v790, 127
    %v859 = vpop.permute.xlu0 %858
    %860 = vrot.lane.b32.xlu0 %v792, 127
    %v861 = vpop.permute.xlu0 %860
    %862 = vrot.lane.b32.xlu0 %v791, 127
    %v863 = vpop.permute.xlu0 %862
    %864 = vrot.lane.b32.xlu0 %v793, 127
    %v865 = vpop.permute.xlu0 %864
    %v866 = vsel %vm190, %v859, %v863
    %v867 = vsel %vm190, %v861, %v865
    %v868 = vsel %vm190, %v863, %v859
    %v869 = vsel %vm190, %v865, %v861
    %v870 = vsel %vm195, %v866, 0.0
    %v871 = vsel %vm196, %v868, 0.0
    %v872 = vsel %vm195, %v867, 0.0
    %v873 = vsel %vm196, %v869, 0.0
    %874 = vrot.lane.b32.xlu0 %v790, 113
    %v875 = vpop.permute.xlu0 %874
    %876 = vrot.lane.b32.xlu0 %v792, 113
    %v877 = vpop.permute.xlu0 %876
    %878 = vrot.lane.b32.xlu0 %v791, 113
    %v879 = vpop.permute.xlu0 %878
    %880 = vrot.lane.b32.xlu0 %v793, 113
    %v881 = vpop.permute.xlu0 %880
    %v882 = vsel %vm203, %v875, %v879
    %v883 = vsel %vm203, %v877, %v881
    %v884 = vsel %vm203, %v879, %v875
    %v885 = vsel %vm203, %v881, %v877
    %v886 = vsel %vm208, %v882, 0.0
    %v887 = vsel %vm209, %v884, 0.0
    %v888 = vsel %vm208, %v883, 0.0
    %v889 = vsel %vm209, %v885, 0.0
    %890 = vrot.lane.b32.xlu0 %v790, 112
    %v891 = vpop.permute.xlu0 %890
    %892 = vrot.lane.b32.xlu0 %v792, 112
    %v893 = vpop.permute.xlu0 %892
    %894 = vrot.lane.b32.xlu0 %v791, 112
    %v895 = vpop.permute.xlu0 %894
    %896 = vrot.lane.b32.xlu0 %v793, 112
    %v897 = vpop.permute.xlu0 %896
    %v898 = vsel %vm216, %v891, %v895
    %v899 = vsel %vm216, %v893, %v897
    %v900 = vsel %vm216, %v895, %v891
    %v901 = vsel %vm216, %v897, %v893
    %v902 = vsel %vm221, %v898, 0.0
    %v903 = vsel %vm222, %v900, 0.0
    %v904 = vsel %vm221, %v899, 0.0
    %v905 = vsel %vm222, %v901, 0.0
    %906 = vrot.lane.b32.xlu0 %v790, 111
    %v907 = vpop.permute.xlu0 %906
    %908 = vrot.lane.b32.xlu0 %v792, 111
    %v909 = vpop.permute.xlu0 %908
    %910 = vrot.lane.b32.xlu0 %v791, 111
    %v911 = vpop.permute.xlu0 %910
    %912 = vrot.lane.b32.xlu0 %v793, 111
    %v913 = vpop.permute.xlu0 %912
    %v914 = vsel %vm229, %v907, %v911
    %v915 = vsel %vm229, %v909, %v913
    %v916 = vsel %vm229, %v911, %v907
    %v917 = vsel %vm229, %v913, %v909
    %v918 = vsel %vm234, %v914, 0.0
    %v919 = vsel %vm235, %v916, 0.0
    %v920 = vsel %vm234, %v915, 0.0
    %v921 = vsel %vm235, %v917, 0.0
    %v923 = vsel %vm469, %v787, 0
    %v926 = vsel %vm469, %v789, 0
    %928 = vmatpush.msra.mxu0 %v904
    %929 = vmatpush.msra.mxu0 %v902
    %930 = vmatpush.msra.mxu0 %v888
    %931 = vmatpush.msra.mxu0 %v886
    %932 = vmatpush.msra.mxu0 %v872
    %933 = vmatpush.msra.mxu0 %v870
    %934 = vmatpush.msra.mxu0 %v792
    %935 = vmatpush.msra.mxu0 %v790
    %936 = vmatpush.msra.mxu0 %v856
    %937 = vmatpush.msra.mxu0 %v854
    %938 = vmatpush.msra.mxu0 %v840
    %939 = vmatpush.msra.mxu0 %v838
    %940 = vmatpush.msra.mxu0 %v824
    %941 = vmatpush.msra.mxu0 %v822
    %942 = vmatpush.msra.mxu0 %v808
    %943 = vmatpush.msra.mxu0 %v806
    %944 = vmatmul.f32.gmra.mxu0 %v786
    %v945 = vpop.f32.mrf.mxu0
    %v946 = vadd.f32 %v421, %v945
    %947 = vmatmul.f32.gmra.mxu0 %v788
    %v948 = vpop.f32.mrf.mxu0
    %v949 = vadd.f32 %v424, %v948
    %950 = vdwg.mxu0
    %951 = vmatpush.msra.mxu0 0.0
    %952 = vmatpush.msra.mxu0 0.0
    %953 = vmatpush.msra.mxu0 0.0
    %954 = vmatpush.msra.mxu0 0.0
    %955 = vmatpush.msra.mxu0 0.0
    %956 = vmatpush.msra.mxu0 0.0
    %957 = vmatpush.msra.mxu0 0.0
    %958 = vmatpush.msra.mxu0 0.0
    %959 = vmatpush.msra.mxu0 0.0
    %960 = vmatpush.msra.mxu0 0.0
    %961 = vmatpush.msra.mxu0 0.0
    %962 = vmatpush.msra.mxu0 0.0
    %963 = vmatpush.msra.mxu0 0.0
    %964 = vmatpush.msra.mxu0 0.0
    %965 = vmatpush.msra.mxu0 %v920
    %966 = vmatpush.msra.mxu0 %v918
    %967 = vmatmul.f32.gmra.mxu0 %v923
    %v968 = vpop.f32.mrf.mxu0
    %v969 = vadd.f32 %v946, %v968
    %970 = vmatmul.f32.gmra.mxu0 %v926
    %v971 = vpop.f32.mrf.mxu0
    %v972 = vadd.f32 %v949, %v971
    %973 = vdwg.mxu0
    %974 = vmatpush.msra.mxu0 %v905
    %975 = vmatpush.msra.mxu0 %v903
    %976 = vmatpush.msra.mxu0 %v889
    %977 = vmatpush.msra.mxu0 %v887
    %978 = vmatpush.msra.mxu0 %v873
    %979 = vmatpush.msra.mxu0 %v871
    %980 = vmatpush.msra.mxu0 %v793
    %981 = vmatpush.msra.mxu0 %v791
    %982 = vmatpush.msra.mxu0 %v857
    %983 = vmatpush.msra.mxu0 %v855
    %984 = vmatpush.msra.mxu0 %v841
    %985 = vmatpush.msra.mxu0 %v839
    %986 = vmatpush.msra.mxu0 %v825
    %987 = vmatpush.msra.mxu0 %v823
    %988 = vmatpush.msra.mxu0 %v809
    %989 = vmatpush.msra.mxu0 %v807
    %990 = vmatmul.f32.gmra.mxu0 %v786
    %v991 = vpop.f32.mrf.mxu0
    %v992 = vadd.f32 %v456, %v991
    %993 = vmatmul.f32.gmra.mxu0 %v788
    %v994 = vpop.f32.mrf.mxu0
    %v995 = vadd.f32 %v459, %v994
    %996 = vdwg.mxu0
    %997 = vmatpush.msra.mxu0 0.0
    %998 = vmatpush.msra.mxu0 0.0
    %999 = vmatpush.msra.mxu0 0.0
    %1000 = vmatpush.msra.mxu0 0.0
    %1001 = vmatpush.msra.mxu0 0.0
    %1002 = vmatpush.msra.mxu0 0.0
    %1003 = vmatpush.msra.mxu0 0.0
    %1004 = vmatpush.msra.mxu0 0.0
    %1005 = vmatpush.msra.mxu0 0.0
    %1006 = vmatpush.msra.mxu0 0.0
    %1007 = vmatpush.msra.mxu0 0.0
    %1008 = vmatpush.msra.mxu0 0.0
    %1009 = vmatpush.msra.mxu0 0.0
    %1010 = vmatpush.msra.mxu0 0.0
    %1011 = vmatpush.msra.mxu0 %v921
    %1012 = vmatpush.msra.mxu0 %v919
    %1013 = vmatmul.f32.gmra.mxu0 %v923
    %v1014 = vpop.f32.mrf.mxu0
    %v1015 = vadd.f32 %v992, %v1014
    %1016 = vmatmul.f32.gmra.mxu0 %v926
    %v1017 = vpop.f32.mrf.mxu0
    %v1018 = vadd.f32 %v995, %v1017
    %1019 = vdwg.mxu0
    %1021 = vset.pattern.permute.xlu0 0
    %1022 = vperm.xlu0 %1021, %v132
    %v1023 = vpop.permute.xlu0 %1022
    %1026 = vset.pattern.permute.xlu0 0
    %1027 = vperm.xlu0 %1026, %v133
    %v1028 = vpop.permute.xlu0 %1027
    %v1030 = vadd.f32 %v969, %v1023
    %v1031 = vadd.f32 %v1015, %v1023
    %v1032 = vadd.f32 %v972, %v1028
    %v1033 = vadd.f32 %v1018, %v1028
    %v1034 = vtanh.pop %v1030
    %v1035 = vtanh.pop %v1031
    %v1036 = vtanh.pop %v1032
    %v1037 = vtanh.pop %v1033
    %v1038 = vsub.f32 1.0, %v646
    %v1039 = vsub.f32 1.0, %v661
    %v1040 = vsub.f32 1.0, %v676
    %v1041 = vsub.f32 1.0, %v691
    %v1042 = vmul.f32 %v1038, %v124
    %v1043 = vmul.f32 %v1039, %v125
    %v1044 = vmul.f32 %v1040, %v126
    %v1045 = vmul.f32 %v1041, %v127
    %v1046 = vmul.f32 %v646, %v1034
    %v1047 = vmul.f32 %v661, %v1035
    %v1048 = vmul.f32 %v676, %v1036
    %v1049 = vmul.f32 %v691, %v1037
    %v1050 = vadd.f32 %v1042, %v1046
    %v1051 = vadd.f32 %v1043, %v1047
    %v1052 = vadd.f32 %v1044, %v1048
    %v1053 = vadd.f32 %v1045, %v1049
    %1054 = vst [vmem:[#allocation9] sm:$0xff] %v1050
    %1055 = vst [vmem:[#allocation9 + $0x8] sm:$0xff] %v1051
    %1056 = vst [vmem:[#allocation9 + $0x10] sm:$0xff] %v1052
    %1057 = vst [vmem:[#allocation9 + $0x18] sm:$0xff] %v1053
    %s1058 = scalar_lea.vmem %s1, 32
    %v1059 = vld [vmem:[%s1058] sm:$0xff]
    %v1060 = vld [vmem:[%s1058 + $0x8] sm:$0xff]
    %v1061 = vld [vmem:[%s1058 + $0x10] sm:$0xff]
    %v1062 = vld [vmem:[%s1058 + $0x18] sm:$0xff]
    %v1063 = vld [vmem:[%s9] sm:$0xff]
    %v1064 = vld [vmem:[%s9 + $0x8] sm:$0xff]
    %v1065 = vld [vmem:[%s9 + $0x10] sm:$0xff]
    %v1066 = vld [vmem:[%s9 + $0x18] sm:$0xff]
    %v1067 = vld [vmem:[%s9 + $0x20] sm:$0xff]
    %v1068 = vld [vmem:[%s9 + $0x28] sm:$0xff]
    %v1069 = vld [vmem:[%s6] sm:$0xff]
    %v1070 = vld [vmem:[%s6 + $0x8] sm:$0xff]
    %v1071 = vld [vmem:[%s6 + $0x10] sm:$0xff]
    %v1072 = vld [vmem:[%s6 + $0x18] sm:$0xff]
    %v1073 = vld [vmem:[%s6 + $0x20] sm:$0xff]
    %v1074 = vld [vmem:[%s6 + $0x28] sm:$0xff]
    %v1076 = vsel %vm469, %v1069, 0
    %v1079 = vsel %vm469, %v1070, 0
    %v1082 = vsel %vm469, %v1071, 0
    %v1085 = vsel %vm469, %v1072, 0
    %v1088 = vsel %vm469, %v1073, 0
    %v1091 = vsel %vm469, %v1074, 0
    %1093 = vmatpush.msra.mxu0 0.0
    %1094 = vmatpush.msra.mxu0 0.0
    %1095 = vmatpush.msra.mxu0 0.0
    %1096 = vmatpush.msra.mxu0 0.0
    %1097 = vmatpush.msra.mxu0 0.0
    %1098 = vmatpush.msra.mxu0 0.0
    %1099 = vmatpush.msra.mxu0 0.0
    %1100 = vmatpush.msra.mxu0 0.0
    %1101 = vmatpush.msra.mxu0 0.0
    %1102 = vmatpush.msra.mxu0 0.0
    %1103 = vmatpush.msra.mxu0 0.0
    %1104 = vmatpush.msra.mxu0 0.0
    %1105 = vmatpush.msra.mxu0 0.0
    %1106 = vmatpush.msra.mxu0 0.0
    %1107 = vmatpush.msra.mxu0 %v1052
    %1108 = vmatpush.msra.mxu0 %v1050
    %1109 = vmatmul.f32.gmra.mxu0 %v1076
    %v1110 = vpop.f32.mrf.mxu0
    %v1111 = vadd.f32 0.0, %v1110
    %1112 = vmatmul.f32.gmra.mxu0 %v1079
    %v1113 = vpop.f32.mrf.mxu0
    %v1114 = vadd.f32 0.0, %v1113
    %1115 = vmatmul.f32.gmra.mxu0 %v1082
    %v1116 = vpop.f32.mrf.mxu0
    %v1117 = vadd.f32 0.0, %v1116
    %1118 = vmatmul.f32.gmra.mxu0 %v1085
    %v1119 = vpop.f32.mrf.mxu0
    %v1120 = vadd.f32 0.0, %v1119
    %1121 = vmatmul.f32.gmra.mxu0 %v1088
    %v1122 = vpop.f32.mrf.mxu0
    %v1123 = vadd.f32 0.0, %v1122
    %1124 = vmatmul.f32.gmra.mxu0 %v1091
    %v1125 = vpop.f32.mrf.mxu0
    %v1126 = vadd.f32 0.0, %v1125
    %1127 = vdwg.mxu0
    %1128 = vmatpush.msra.mxu0 0.0
    %1129 = vmatpush.msra.mxu0 0.0
    %1130 = vmatpush.msra.mxu0 0.0
    %1131 = vmatpush.msra.mxu0 0.0
    %1132 = vmatpush.msra.mxu0 0.0
    %1133 = vmatpush.msra.mxu0 0.0
    %1134 = vmatpush.msra.mxu0 0.0
    %1135 = vmatpush.msra.mxu0 0.0
    %1136 = vmatpush.msra.mxu0 0.0
    %1137 = vmatpush.msra.mxu0 0.0
    %1138 = vmatpush.msra.mxu0 0.0
    %1139 = vmatpush.msra.mxu0 0.0
    %1140 = vmatpush.msra.mxu0 0.0
    %1141 = vmatpush.msra.mxu0 0.0
    %1142 = vmatpush.msra.mxu0 %v1053
    %1143 = vmatpush.msra.mxu0 %v1051
    %1144 = vmatmul.f32.gmra.mxu0 %v1076
    %v1145 = vpop.f32.mrf.mxu0
    %v1146 = vadd.f32 0.0, %v1145
    %1147 = vmatmul.f32.gmra.mxu0 %v1079
    %v1148 = vpop.f32.mrf.mxu0
    %v1149 = vadd.f32 0.0, %v1148
    %1150 = vmatmul.f32.gmra.mxu0 %v1082
    %v1151 = vpop.f32.mrf.mxu0
    %v1152 = vadd.f32 0.0, %v1151
    %1153 = vmatmul.f32.gmra.mxu0 %v1085
    %v1154 = vpop.f32.mrf.mxu0
    %v1155 = vadd.f32 0.0, %v1154
    %1156 = vmatmul.f32.gmra.mxu0 %v1088
    %v1157 = vpop.f32.mrf.mxu0
    %v1158 = vadd.f32 0.0, %v1157
    %1159 = vmatmul.f32.gmra.mxu0 %v1091
    %v1160 = vpop.f32.mrf.mxu0
    %v1161 = vadd.f32 0.0, %v1160
    %1162 = vdwg.mxu0
    %v1163 = vld [vmem:[%s7] sm:$0xff]
    %v1164 = vld [vmem:[%s7 + $0x8] sm:$0xff]
    %v1165 = vld [vmem:[%s7 + $0x10] sm:$0xff]
    %v1166 = vld [vmem:[%s7 + $0x18] sm:$0xff]
    %v1168 = vsel %vm469, %v1163, 0
    %v1171 = vsel %vm469, %v1164, 0
    %v1174 = vsel %vm469, %v1165, 0
    %v1177 = vsel %vm469, %v1166, 0
    %1179 = vmatpush.msra.mxu0 0.0
    %1180 = vmatpush.msra.mxu0 0.0
    %1181 = vmatpush.msra.mxu0 0.0
    %1182 = vmatpush.msra.mxu0 0.0
    %1183 = vmatpush.msra.mxu0 0.0
    %1184 = vmatpush.msra.mxu0 0.0
    %1185 = vmatpush.msra.mxu0 0.0
    %1186 = vmatpush.msra.mxu0 0.0
    %1187 = vmatpush.msra.mxu0 0.0
    %1188 = vmatpush.msra.mxu0 0.0
    %1189 = vmatpush.msra.mxu0 0.0
    %1190 = vmatpush.msra.mxu0 0.0
    %1191 = vmatpush.msra.mxu0 0.0
    %1192 = vmatpush.msra.mxu0 0.0
    %1193 = vmatpush.msra.mxu0 %v1061
    %1194 = vmatpush.msra.mxu0 %v1059
    %1195 = vmatmul.f32.gmra.mxu0 %v1168
    %v1196 = vpop.f32.mrf.mxu0
    %v1197 = vadd.f32 0.0, %v1196
    %1198 = vmatmul.f32.gmra.mxu0 %v1171
    %v1199 = vpop.f32.mrf.mxu0
    %v1200 = vadd.f32 0.0, %v1199
    %1201 = vmatmul.f32.gmra.mxu0 %v1174
    %v1202 = vpop.f32.mrf.mxu0
    %v1203 = vadd.f32 0.0, %v1202
    %1204 = vmatmul.f32.gmra.mxu0 %v1177
    %v1205 = vpop.f32.mrf.mxu0
    %v1206 = vadd.f32 0.0, %v1205
    %1207 = vdwg.mxu0
    %1208 = vmatpush.msra.mxu0 0.0
    %1209 = vmatpush.msra.mxu0 0.0
    %1210 = vmatpush.msra.mxu0 0.0
    %1211 = vmatpush.msra.mxu0 0.0
    %1212 = vmatpush.msra.mxu0 0.0
    %1213 = vmatpush.msra.mxu0 0.0
    %1214 = vmatpush.msra.mxu0 0.0
    %1215 = vmatpush.msra.mxu0 0.0
    %1216 = vmatpush.msra.mxu0 0.0
    %1217 = vmatpush.msra.mxu0 0.0
    %1218 = vmatpush.msra.mxu0 0.0
    %1219 = vmatpush.msra.mxu0 0.0
    %1220 = vmatpush.msra.mxu0 0.0
    %1221 = vmatpush.msra.mxu0 0.0
    %1222 = vmatpush.msra.mxu0 %v1062
    %1223 = vmatpush.msra.mxu0 %v1060
    %1224 = vmatmul.f32.gmra.mxu0 %v1168
    %v1225 = vpop.f32.mrf.mxu0
    %v1226 = vadd.f32 0.0, %v1225
    %1227 = vmatmul.f32.gmra.mxu0 %v1171
    %v1228 = vpop.f32.mrf.mxu0
    %v1229 = vadd.f32 0.0, %v1228
    %1230 = vmatmul.f32.gmra.mxu0 %v1174
    %v1231 = vpop.f32.mrf.mxu0
    %v1232 = vadd.f32 0.0, %v1231
    %1233 = vmatmul.f32.gmra.mxu0 %v1177
    %v1234 = vpop.f32.mrf.mxu0
    %v1235 = vadd.f32 0.0, %v1234
    %1236 = vdwg.mxu0
    %v1237 = vadd.f32 %v1197, %v1111
    %v1238 = vadd.f32 %v1226, %v1146
    %v1239 = vadd.f32 %v1200, %v1114
    %v1240 = vadd.f32 %v1229, %v1149
    %1242 = vset.pattern.permute.xlu0 0
    %1243 = vperm.xlu0 %1242, %v1063
    %v1244 = vpop.permute.xlu0 %1243
    %1247 = vset.pattern.permute.xlu0 0
    %1248 = vperm.xlu0 %1247, %v1064
    %v1249 = vpop.permute.xlu0 %1248
    %v1251 = vadd.f32 %v1237, %v1244
    %v1252 = vadd.f32 %v1238, %v1244
    %v1253 = vadd.f32 %v1239, %v1249
    %v1254 = vadd.f32 %v1240, %v1249
    %v1255 = vxor.u32 %v1251, 2147483648
    %v1256 = vxor.u32 %v1252, 2147483648
    %v1257 = vxor.u32 %v1253, 2147483648
    %v1258 = vxor.u32 %v1254, 2147483648
    %v1259 = vmul.f32 %v1255, 1.442695
    %v1260 = vpow.pop %v1259
    %v1261 = vmul.f32 %v1256, 1.442695
    %v1262 = vpow.pop %v1261
    %v1263 = vmul.f32 %v1257, 1.442695
    %v1264 = vpow.pop %v1263
    %v1265 = vmul.f32 %v1258, 1.442695
    %v1266 = vpow.pop %v1265
    %v1267 = vadd.f32 %v1260, 1.0
    %v1268 = vadd.f32 %v1262, 1.0
    %v1269 = vadd.f32 %v1264, 1.0
    %v1270 = vadd.f32 %v1266, 1.0
    %v1271 = vrcp.pop %v1267
    %v1272 = vmul.f32 %v1267, %v1271
    %v1273 = vsub.f32 1.0, %v1272
    %v1274 = vmul.f32 %v1271, %v1273
    %v1275 = vadd.f32 %v1271, %v1274
    %vm1276 = vweird.f32 %v1267
    %vm1277 = vweird.f32 %v1271
    %vm1278 = vmor %vm1276, %vm1277
    %v1279 = vsel %vm1278, %v1271, %v1275
    %v1280 = vand.u32 2147483647, %v1267
    %vm1281 = vcmp.eq.f32.partialorder %v1280, 8.507059e+37
    %v1282 = vand.u32 %v1267, 2147483648
    %v1283 = vor.u32 1.1754944e-38, %v1282
    %v1284 = vsel %vm1281, %v1283, %v1279
    %v1285 = vmul.f32 1.0, %v1284
    %v1286 = vrcp.pop %v1268
    %v1287 = vmul.f32 %v1268, %v1286
    %v1288 = vsub.f32 1.0, %v1287
    %v1289 = vmul.f32 %v1286, %v1288
    %v1290 = vadd.f32 %v1286, %v1289
    %vm1291 = vweird.f32 %v1268
    %vm1292 = vweird.f32 %v1286
    %vm1293 = vmor %vm1291, %vm1292
    %v1294 = vsel %vm1293, %v1286, %v1290
    %v1295 = vand.u32 2147483647, %v1268
    %vm1296 = vcmp.eq.f32.partialorder %v1295, 8.507059e+37
    %v1297 = vand.u32 %v1268, 2147483648
    %v1298 = vor.u32 1.1754944e-38, %v1297
    %v1299 = vsel %vm1296, %v1298, %v1294
    %v1300 = vmul.f32 1.0, %v1299
    %v1301 = vrcp.pop %v1269
    %v1302 = vmul.f32 %v1269, %v1301
    %v1303 = vsub.f32 1.0, %v1302
    %v1304 = vmul.f32 %v1301, %v1303
    %v1305 = vadd.f32 %v1301, %v1304
    %vm1306 = vweird.f32 %v1269
    %vm1307 = vweird.f32 %v1301
    %vm1308 = vmor %vm1306, %vm1307
    %v1309 = vsel %vm1308, %v1301, %v1305
    %v1310 = vand.u32 2147483647, %v1269
    %vm1311 = vcmp.eq.f32.partialorder %v1310, 8.507059e+37
    %v1312 = vand.u32 %v1269, 2147483648
    %v1313 = vor.u32 1.1754944e-38, %v1312
    %v1314 = vsel %vm1311, %v1313, %v1309
    %v1315 = vmul.f32 1.0, %v1314
    %v1316 = vrcp.pop %v1270
    %v1317 = vmul.f32 %v1270, %v1316
    %v1318 = vsub.f32 1.0, %v1317
    %v1319 = vmul.f32 %v1316, %v1318
    %v1320 = vadd.f32 %v1316, %v1319
    %vm1321 = vweird.f32 %v1270
    %vm1322 = vweird.f32 %v1316
    %vm1323 = vmor %vm1321, %vm1322
    %v1324 = vsel %vm1323, %v1316, %v1320
    %v1325 = vand.u32 2147483647, %v1270
    %vm1326 = vcmp.eq.f32.partialorder %v1325, 8.507059e+37
    %v1327 = vand.u32 %v1270, 2147483648
    %v1328 = vor.u32 1.1754944e-38, %v1327
    %v1329 = vsel %vm1326, %v1328, %v1324
    %v1330 = vmul.f32 1.0, %v1329
    %v1331 = vadd.f32 %v1203, %v1117
    %v1332 = vadd.f32 %v1232, %v1152
    %v1333 = vadd.f32 %v1206, %v1120
    %v1334 = vadd.f32 %v1235, %v1155
    %1336 = vset.pattern.permute.xlu0 0
    %1337 = vperm.xlu0 %1336, %v1065
    %v1338 = vpop.permute.xlu0 %1337
    %1341 = vset.pattern.permute.xlu0 0
    %1342 = vperm.xlu0 %1341, %v1066
    %v1343 = vpop.permute.xlu0 %1342
    %v1345 = vadd.f32 %v1331, %v1338
    %v1346 = vadd.f32 %v1332, %v1338
    %v1347 = vadd.f32 %v1333, %v1343
    %v1348 = vadd.f32 %v1334, %v1343
    %v1349 = vxor.u32 %v1345, 2147483648
    %v1350 = vxor.u32 %v1346, 2147483648
    %v1351 = vxor.u32 %v1347, 2147483648
    %v1352 = vxor.u32 %v1348, 2147483648
    %v1353 = vmul.f32 %v1349, 1.442695
    %v1354 = vpow.pop %v1353
    %v1355 = vmul.f32 %v1350, 1.442695
    %v1356 = vpow.pop %v1355
    %v1357 = vmul.f32 %v1351, 1.442695
    %v1358 = vpow.pop %v1357
    %v1359 = vmul.f32 %v1352, 1.442695
    %v1360 = vpow.pop %v1359
    %v1361 = vadd.f32 %v1354, 1.0
    %v1362 = vadd.f32 %v1356, 1.0
    %v1363 = vadd.f32 %v1358, 1.0
    %v1364 = vadd.f32 %v1360, 1.0
    %v1365 = vrcp.pop %v1361
    %v1366 = vmul.f32 %v1361, %v1365
    %v1367 = vsub.f32 1.0, %v1366
    %v1368 = vmul.f32 %v1365, %v1367
    %v1369 = vadd.f32 %v1365, %v1368
    %vm1370 = vweird.f32 %v1361
    %vm1371 = vweird.f32 %v1365
    %vm1372 = vmor %vm1370, %vm1371
    %v1373 = vsel %vm1372, %v1365, %v1369
    %v1374 = vand.u32 2147483647, %v1361
    %vm1375 = vcmp.eq.f32.partialorder %v1374, 8.507059e+37
    %v1376 = vand.u32 %v1361, 2147483648
    %v1377 = vor.u32 1.1754944e-38, %v1376
    %v1378 = vsel %vm1375, %v1377, %v1373
    %v1379 = vmul.f32 1.0, %v1378
    %v1380 = vrcp.pop %v1362
    %v1381 = vmul.f32 %v1362, %v1380
    %v1382 = vsub.f32 1.0, %v1381
    %v1383 = vmul.f32 %v1380, %v1382
    %v1384 = vadd.f32 %v1380, %v1383
    %vm1385 = vweird.f32 %v1362
    %vm1386 = vweird.f32 %v1380
    %vm1387 = vmor %vm1385, %vm1386
    %v1388 = vsel %vm1387, %v1380, %v1384
    %v1389 = vand.u32 2147483647, %v1362
    %vm1390 = vcmp.eq.f32.partialorder %v1389, 8.507059e+37
    %v1391 = vand.u32 %v1362, 2147483648
    %v1392 = vor.u32 1.1754944e-38, %v1391
    %v1393 = vsel %vm1390, %v1392, %v1388
    %v1394 = vmul.f32 1.0, %v1393
    %v1395 = vrcp.pop %v1363
    %v1396 = vmul.f32 %v1363, %v1395
    %v1397 = vsub.f32 1.0, %v1396
    %v1398 = vmul.f32 %v1395, %v1397
    %v1399 = vadd.f32 %v1395, %v1398
    %vm1400 = vweird.f32 %v1363
    %vm1401 = vweird.f32 %v1395
    %vm1402 = vmor %vm1400, %vm1401
    %v1403 = vsel %vm1402, %v1395, %v1399
    %v1404 = vand.u32 2147483647, %v1363
    %vm1405 = vcmp.eq.f32.partialorder %v1404, 8.507059e+37
    %v1406 = vand.u32 %v1363, 2147483648
    %v1407 = vor.u32 1.1754944e-38, %v1406
    %v1408 = vsel %vm1405, %v1407, %v1403
    %v1409 = vmul.f32 1.0, %v1408
    %v1410 = vrcp.pop %v1364
    %v1411 = vmul.f32 %v1364, %v1410
    %v1412 = vsub.f32 1.0, %v1411
    %v1413 = vmul.f32 %v1410, %v1412
    %v1414 = vadd.f32 %v1410, %v1413
    %vm1415 = vweird.f32 %v1364
    %vm1416 = vweird.f32 %v1410
    %vm1417 = vmor %vm1415, %vm1416
    %v1418 = vsel %vm1417, %v1410, %v1414
    %v1419 = vand.u32 2147483647, %v1364
    %vm1420 = vcmp.eq.f32.partialorder %v1419, 8.507059e+37
    %v1421 = vand.u32 %v1364, 2147483648
    %v1422 = vor.u32 1.1754944e-38, %v1421
    %v1423 = vsel %vm1420, %v1422, %v1418
    %v1424 = vmul.f32 1.0, %v1423
    %v1425 = vld [vmem:[#allocation6] sm:$0xff]
    %v1426 = vld [vmem:[#allocation6 + $0x8] sm:$0xff]
    %v1427 = vmul.f32 %v1379, %v1059
    %v1428 = vmul.f32 %v1394, %v1060
    %v1429 = vmul.f32 %v1409, %v1061
    %v1430 = vmul.f32 %v1424, %v1062
    %v1432 = vsel %vm469, %v1425, 0
    %v1435 = vsel %vm469, %v1426, 0
    %1437 = vmatpush.msra.mxu0 0.0
    %1438 = vmatpush.msra.mxu0 0.0
    %1439 = vmatpush.msra.mxu0 0.0
    %1440 = vmatpush.msra.mxu0 0.0
    %1441 = vmatpush.msra.mxu0 0.0
    %1442 = vmatpush.msra.mxu0 0.0
    %1443 = vmatpush.msra.mxu0 0.0
    %1444 = vmatpush.msra.mxu0 0.0
    %1445 = vmatpush.msra.mxu0 0.0
    %1446 = vmatpush.msra.mxu0 0.0
    %1447 = vmatpush.msra.mxu0 0.0
    %1448 = vmatpush.msra.mxu0 0.0
    %1449 = vmatpush.msra.mxu0 0.0
    %1450 = vmatpush.msra.mxu0 0.0
    %1451 = vmatpush.msra.mxu0 %v1429
    %1452 = vmatpush.msra.mxu0 %v1427
    %1453 = vmatmul.f32.gmra.mxu0 %v1432
    %v1454 = vpop.f32.mrf.mxu0
    %v1455 = vadd.f32 %v1123, %v1454
    %1456 = vmatmul.f32.gmra.mxu0 %v1435
    %v1457 = vpop.f32.mrf.mxu0
    %v1458 = vadd.f32 %v1126, %v1457
    %1459 = vdwg.mxu0
    %1460 = vmatpush.msra.mxu0 0.0
    %1461 = vmatpush.msra.mxu0 0.0
    %1462 = vmatpush.msra.mxu0 0.0
    %1463 = vmatpush.msra.mxu0 0.0
    %1464 = vmatpush.msra.mxu0 0.0
    %1465 = vmatpush.msra.mxu0 0.0
    %1466 = vmatpush.msra.mxu0 0.0
    %1467 = vmatpush.msra.mxu0 0.0
    %1468 = vmatpush.msra.mxu0 0.0
    %1469 = vmatpush.msra.mxu0 0.0
    %1470 = vmatpush.msra.mxu0 0.0
    %1471 = vmatpush.msra.mxu0 0.0
    %1472 = vmatpush.msra.mxu0 0.0
    %1473 = vmatpush.msra.mxu0 0.0
    %1474 = vmatpush.msra.mxu0 %v1430
    %1475 = vmatpush.msra.mxu0 %v1428
    %1476 = vmatmul.f32.gmra.mxu0 %v1432
    %v1477 = vpop.f32.mrf.mxu0
    %v1478 = vadd.f32 %v1158, %v1477
    %1479 = vmatmul.f32.gmra.mxu0 %v1435
    %v1480 = vpop.f32.mrf.mxu0
    %v1481 = vadd.f32 %v1161, %v1480
    %1482 = vdwg.mxu0
    %1484 = vset.pattern.permute.xlu0 0
    %1485 = vperm.xlu0 %1484, %v1067
    %v1486 = vpop.permute.xlu0 %1485
    %1489 = vset.pattern.permute.xlu0 0
    %1490 = vperm.xlu0 %1489, %v1068
    %v1491 = vpop.permute.xlu0 %1490
    %v1493 = vadd.f32 %v1455, %v1486
    %v1494 = vadd.f32 %v1478, %v1486
    %v1495 = vadd.f32 %v1458, %v1491
    %v1496 = vadd.f32 %v1481, %v1491
    %v1497 = vtanh.pop %v1493
    %v1498 = vtanh.pop %v1494
    %v1499 = vtanh.pop %v1495
    %v1500 = vtanh.pop %v1496
    %v1501 = vsub.f32 1.0, %v1285
    %v1502 = vsub.f32 1.0, %v1300
    %v1503 = vsub.f32 1.0, %v1315
    %v1504 = vsub.f32 1.0, %v1330
    %v1505 = vmul.f32 %v1501, %v1059
    %v1506 = vmul.f32 %v1502, %v1060
    %v1507 = vmul.f32 %v1503, %v1061
    %v1508 = vmul.f32 %v1504, %v1062
    %v1509 = vmul.f32 %v1285, %v1497
    %v1510 = vmul.f32 %v1300, %v1498
    %v1511 = vmul.f32 %v1315, %v1499
    %v1512 = vmul.f32 %v1330, %v1500
    %v1513 = vadd.f32 %v1505, %v1509
    %v1514 = vadd.f32 %v1506, %v1510
    %v1515 = vadd.f32 %v1507, %v1511
    %v1516 = vadd.f32 %v1508, %v1512
    %s1517 = scalar_lea.vmem [#allocation9], 32
    %1518 = vst [vmem:[%s1517] sm:$0xff] %v1513
    %1519 = vst [vmem:[%s1517 + $0x8] sm:$0xff] %v1514
    %1520 = vst [vmem:[%s1517 + $0x10] sm:$0xff] %v1515
    %1521 = vst [vmem:[%s1517 + $0x18] sm:$0xff] %v1516
    %v1522 = vld [vmem:[%s10] sm:$0x1]
    %v1523 = vld [vmem:[#allocation2] sm:$0x1]
    %1525 = vset.pattern.permute.xlu0 0
    %1526 = vperm.xlu0 %1525, %v1523
    %v1527 = vpop.permute.xlu0 %1526
    %v1529 = vperm.slane %v1527, 0
    %v1531 = vsel %vm469, %v1522, 0
    %1533 = vmatpush.msra.mxu0 0.0
    %1534 = vmatpush.msra.mxu0 0.0
    %1535 = vmatpush.msra.mxu0 0.0
    %1536 = vmatpush.msra.mxu0 0.0
    %1537 = vmatpush.msra.mxu0 0.0
    %1538 = vmatpush.msra.mxu0 0.0
    %1539 = vmatpush.msra.mxu0 0.0
    %1540 = vmatpush.msra.mxu0 0.0
    %1541 = vmatpush.msra.mxu0 0.0
    %1542 = vmatpush.msra.mxu0 0.0
    %1543 = vmatpush.msra.mxu0 0.0
    %1544 = vmatpush.msra.mxu0 0.0
    %1545 = vmatpush.msra.mxu0 0.0
    %1546 = vmatpush.msra.mxu0 0.0
    %1547 = vmatpush.msra.mxu0 %v1515
    %1548 = vmatpush.msra.mxu0 %v1513
    %1549 = vmatmul.f32.gmra.mxu0 %v1531
    %v1550 = vpop.f32.mrf.mxu0
    %v1551 = vadd.f32 %v1529, %v1550
    %1552 = vdwg.mxu0
    %1553 = vmatpush.msra.mxu0 0.0
    %1554 = vmatpush.msra.mxu0 0.0
    %1555 = vmatpush.msra.mxu0 0.0
    %1556 = vmatpush.msra.mxu0 0.0
    %1557 = vmatpush.msra.mxu0 0.0
    %1558 = vmatpush.msra.mxu0 0.0
    %1559 = vmatpush.msra.mxu0 0.0
    %1560 = vmatpush.msra.mxu0 0.0
    %1561 = vmatpush.msra.mxu0 0.0
    %1562 = vmatpush.msra.mxu0 0.0
    %1563 = vmatpush.msra.mxu0 0.0
    %1564 = vmatpush.msra.mxu0 0.0
    %1565 = vmatpush.msra.mxu0 0.0
    %1566 = vmatpush.msra.mxu0 0.0
    %1567 = vmatpush.msra.mxu0 %v1516
    %1568 = vmatpush.msra.mxu0 %v1514
    %1569 = vmatmul.f32.gmra.mxu0 %v1531
    %v1570 = vpop.f32.mrf.mxu0
    %v1571 = vadd.f32 %v1529, %v1570
    %1572 = vdwg.mxu0
    %v1575 = vrot.slane %v1571, 7
    %vm1576 = vcmask 1040384
    %v1577 = vsel %vm1576, %v1551, %v1575
    %v1579 = vlaneseq
    %vm1580 = vcmp.ge.s32.totalorder %v1579, 0
    %vm1581 = vcmp.lt.s32.totalorder %v1579, 256
    %vm1582 = vmand %vm1580, %vm1581
    %1583 = vst.msk [vmem:[#allocation8] sm:$0x3] %vm1582, %v1577
    // Predicated region
    $region58: #{tpu_custom_call.1} parent=1 // pred_check
      _
    $region59: #{tpu_custom_call.1} parent=1 // pred_check_branch
      %1585 = sbr.rel (0) target = $region61
    $region60: #{tpu_custom_call.1} parent=1 // pred_region
      %1587 = vsyncadd [#allocation5], 0
      %s1589 = sshll.u32 [#allocation8], 4
      %s1590 = int_to_ptr.vmem [resolvable:$true] %s1589
      %s1591 = sshll.u32 %s12, 4
      %s1592 = int_to_ptr.hbm [resolvable:$true] %s1591
      %1594 = dma.vmem_to_hbm [thread:$0]  %s1590, 32, %s1592, [#allocation5]
    $region61: #{tpu_custom_call.1} parent=1 // pred_fallthru
      _
    // Predicated region
    $region62: #{tpu_custom_call.1} parent=1 // pred_check
      _
    $region63: #{tpu_custom_call.1} parent=1 // pred_check_branch
      %1596 = sbr.rel (0) target = $region65
    $region64: #{tpu_custom_call.1} parent=1 // pred_region
      %1598 = vsyncadd [#allocation10], 0
      %s1599 = sshll.u32 [#allocation9], 4
      %s1600 = int_to_ptr.vmem [resolvable:$true] %s1599
      %s1601 = sshll.u32 %s13, 4
      %s1602 = int_to_ptr.hbm [resolvable:$true] %s1601
      %1607 = dma.vmem_to_hbm [thread:$0]  %s1600, 1024, %s1602, [#allocation10], 256, 256, 16
    $region65: #{tpu_custom_call.1} parent=1 // pred_fallthru
      _
    // Predicated region
    $region66: #{tpu_custom_call.1} parent=1 // pred_check
      _
    $region67: #{tpu_custom_call.1} parent=1 // pred_check_branch
      %1609 = sbr.rel (0) target = $region69
    $region68: #{tpu_custom_call.1} parent=1 // pred_region
      %1611 = dma.done [#allocation5], 32
    $region69: #{tpu_custom_call.1} parent=1 // pred_fallthru
      _
    // Predicated region
    $region70: #{tpu_custom_call.1} parent=1 // pred_check
      _
    $region71: #{tpu_custom_call.1} parent=1 // pred_check_branch
      %1613 = sbr.rel (0) target = $region73
    $region72: #{tpu_custom_call.1} parent=1 // pred_region
      %1615 = dma.done [#allocation10], 1024
    $region73: #{tpu_custom_call.1} parent=1 // pred_fallthru
      _
    %1616 = vsyncpa [#allocation4], 1
    %1617 = vsyncpa [#allocation7], 1
    %1618 = vsyncpa [#allocation5], 1
    %1619 = vsyncpa [#allocation10], 1

</llo_original>
